<compile_context>
chip_gen: v5e
topology: v5e:2x2
jax: 0.10.0
libtpu: 0.0.40
codegen_flags: <defaults>
</compile_context>

<pallas_src>
import jax
import jax.numpy as jnp
from jax.experimental import pallas as pl
from jax.experimental.pallas import tpu as pltpu


def _make_ef_lstm_kernel(num_layers, T, B, H):
    def kernel(*refs):
        # refs: x(T*B,D), scale(T*B,1), shift(T*B,1),
        #       per layer l: w_ih(D_l,4H), w_hh(H,4H), b(1,4H),
        #       w1(H,H), b1(1,H), wout(H,O), bout(1,O), out(B,O)
        idx = 0
        x_ref = refs[idx]; idx += 1
        scale_ref = refs[idx]; idx += 1
        shift_ref = refs[idx]; idx += 1
        layers = []
        for _ in range(num_layers):
            layers.append(tuple(refs[idx:idx + 3]))
            idx += 3
        w1_ref, b1_ref, wout_ref, bout_ref = refs[idx:idx + 4]
        idx += 4
        out_ref = refs[idx]

        # BatchNorm1d(input_len) eval-mode affine, hoisted out of the
        # recurrence: one VPU mul+add over the whole (T*B, D) block.
        x_n = x_ref[...] * scale_ref[...] + shift_ref[...]

        h = None
        h_seq = None  # previous layer's per-step hidden states (vreg values)
        for l in range(num_layers):
            w_ih_ref, w_hh_ref, b_ref = layers[l]
            w_hh = w_hh_ref[...]          # (H, 4H) hoisted out of the loop
            b_all = b_ref[...]            # (1, 4H) = b_ih + b_hh
            is_last = (l == num_layers - 1)

            if l == 0:
                # Hoisted, time-invariant input projection for the whole
                # sequence: single (T*B, D) @ (D, 4H) MXU call, bias folded in.
                xp = jnp.dot(x_n, w_ih_ref[...],
                             preferred_element_type=jnp.float32) + b_all
            else:
                w_ih = w_ih_ref[...]      # (H, 4H)

            h = jnp.zeros((B, H), jnp.float32)
            c = jnp.zeros((B, H), jnp.float32)
            new_seq = []
            for t in range(T):            # fully unrolled; T is static
                if l == 0:
                    pre = xp[t * B:(t + 1) * B, :]          # (B, 4H)
                else:
                    # Previous layer's h_t is a live value; this matmul has no
                    # recurrent dependence, so the scheduler hides it under
                    # the serial h-chain.
                    pre = jnp.dot(h_seq[t], w_ih,
                                  preferred_element_type=jnp.float32) + b_all
                g = pre + jnp.dot(h, w_hh,
                                  preferred_element_type=jnp.float32)  # (B,4H)
                # Whole 128-lane tile through the EUP, then split per gate.
                sig = jax.nn.sigmoid(g)
                tnh = jnp.tanh(g)
                i_g = sig[:, 0 * H:1 * H]
                f_g = sig[:, 1 * H:2 * H]
                g_g = tnh[:, 2 * H:3 * H]
                o_g = sig[:, 3 * H:4 * H]
                c = f_g * c + i_g * g_g
                h = o_g * jnp.tanh(c)
                if not is_last:
                    new_seq.append(h)
            h_seq = new_seq

        # head: Linear -> ReLU -> Linear  (dropout = identity at inference)
        hid = jnp.maximum(
            jnp.dot(h, w1_ref[...], preferred_element_type=jnp.float32)
            + b1_ref[...], 0.0)
        out_ref[...] = (jnp.dot(hid, wout_ref[...],
                                preferred_element_type=jnp.float32)
                        + bout_ref[...])
        # TODO(synk): if O or B ever grow, add a parallel batch grid (v7x dual
        # TC) and present the head output lane-dense.
    return kernel


def ef_lstm_forward(x, params):
    """x: (B, T, D) fused (early-fusion) input, batch_first like the PyTorch LSTM."""
    B, T, D = x.shape
    H = params['hidden']
    O = params['out_dim']
    L = params['num_layers']

    # Time-major rows: row t*B + b  ->  (T*B, D). Pure layout, no compute.
    x_rows = jnp.transpose(x, (1, 0, 2)).reshape(T * B, D).astype(jnp.float32)

    eps = 1e-5
    scale = (params['bn_gamma'] / jnp.sqrt(params['bn_var'] + eps)).astype(jnp.float32)
    shift = (params['bn_beta'] - params['bn_mean'] * scale).astype(jnp.float32)
    scale_rows = jnp.repeat(scale, B).reshape(T * B, 1)
    shift_rows = jnp.repeat(shift, B).reshape(T * B, 1)

    vmem = pl.BlockSpec(memory_space=pltpu.MemorySpace.VMEM)
    inputs = [x_rows, scale_rows, shift_rows]
    in_specs = [vmem, vmem, vmem]

    for l in range(L):
        w_ih, w_hh, b_ih, b_hh = params['lstm'][l]
        # Fused gate weights: (in, 4H) with gates i|f|g|o along the 4H axis
        # (PyTorch order preserved by the plain transpose).
        inputs += [jnp.transpose(w_ih).astype(jnp.float32),       # (D_l, 4H)
                   jnp.transpose(w_hh).astype(jnp.float32),       # (H, 4H)
                   (b_ih + b_hh).reshape(1, 4 * H).astype(jnp.float32)]
        in_specs += [vmem] * 3

    inputs += [params['w1'].T.astype(jnp.float32),
               params['b1'].reshape(1, H).astype(jnp.float32),
               params['wout'].T.astype(jnp.float32),
               params['bout'].reshape(1, O).astype(jnp.float32)]
    in_specs += [vmem] * 4

    kernel = _make_ef_lstm_kernel(L, T, B, H)
    out = pl.pallas_call(
        kernel,
        out_shape=jax.ShapeDtypeStruct((B, O), jnp.float32),
        in_specs=in_specs,
        out_specs=vmem,
    )(*inputs)
    # dropout on h_n[-1] and on relu(linear(.)) is identity at inference
    return {'M': out}


def ef_lstm_ref(x, params):
    """Pure-JAX reference mirroring the PyTorch forward (eval mode)."""
    eps = 1e-5
    scale = params['bn_gamma'] / jnp.sqrt(params['bn_var'] + eps)
    shift = params['bn_beta'] - params['bn_mean'] * scale
    xn = x * scale[None, :, None] + shift[None, :, None]
    H = params['hidden']
    B, T, _ = x.shape
    inp = xn
    h = None
    for l in range(params['num_layers']):
        w_ih, w_hh, b_ih, b_hh = params['lstm'][l]
        h = jnp.zeros((B, H), jnp.float32)
        c = jnp.zeros((B, H), jnp.float32)
        outs = []
        for t in range(T):
            g = inp[:, t, :] @ w_ih.T + h @ w_hh.T + b_ih + b_hh
            i = jax.nn.sigmoid(g[:, :H])
            f = jax.nn.sigmoid(g[:, H:2 * H])
            gg = jnp.tanh(g[:, 2 * H:3 * H])
            o = jax.nn.sigmoid(g[:, 3 * H:])
            c = f * c + i * gg
            h = o * jnp.tanh(c)
            outs.append(h)
        inp = jnp.stack(outs, axis=1)
    hid = jnp.maximum(h @ params['w1'].T + params['b1'], 0.0)
    return hid @ params['wout'].T + params['bout']


if __name__ == "__main__":
    # args: feature_dims=(16, 8, 8), modality='tav' -> in_size=32,
    #       input_lens=8, hidden_dims=32, num_layers=2, output_dim=1,
    #       dropout (inference -> identity).
    B, T = 2, 8
    text_d, audio_d, video_d = 16, 8, 8
    D = text_d + audio_d + video_d
    H, L, O = 32, 2, 1

    key = jax.random.PRNGKey(0)
    keys = iter(jax.random.split(key, 32))
    k = 1.0 / float(jnp.sqrt(jnp.float32(H)))

    lstm_params = []
    for l in range(L):
        d_in = D if l == 0 else H
        w_ih = jax.random.uniform(next(keys), (4 * H, d_in), minval=-k, maxval=k)
        w_hh = jax.random.uniform(next(keys), (4 * H, H), minval=-k, maxval=k)
        b_ih = jax.random.uniform(next(keys), (4 * H,), minval=-k, maxval=k)
        b_hh = jax.random.uniform(next(keys), (4 * H,), minval=-k, maxval=k)
        lstm_params.append((w_ih, w_hh, b_ih, b_hh))

    params = dict(
        hidden=H, out_dim=O, num_layers=L,
        bn_gamma=jax.random.uniform(next(keys), (T,), minval=0.5, maxval=1.5),
        bn_beta=jax.random.uniform(next(keys), (T,), minval=-0.1, maxval=0.1),
        bn_mean=jax.random.uniform(next(keys), (T,), minval=-0.1, maxval=0.1),
        bn_var=jax.random.uniform(next(keys), (T,), minval=0.8, maxval=1.2),
        lstm=lstm_params,
        w1=jax.random.uniform(next(keys), (H, H), minval=-k, maxval=k),
        b1=jax.random.uniform(next(keys), (H,), minval=-k, maxval=k),
        wout=jax.random.uniform(next(keys), (O, H), minval=-k, maxval=k),
        bout=jax.random.uniform(next(keys), (O,), minval=-k, maxval=k),
    )

    text_x = jax.random.normal(next(keys), (B, T, text_d), dtype=jnp.float32)
    audio_x = jax.random.normal(next(keys), (B, T, audio_d), dtype=jnp.float32)
    video_x = jax.random.normal(next(keys), (B, T, video_d), dtype=jnp.float32)
    # early fusion for modality='tav'
    x = jnp.concatenate([text_x, audio_x, video_x], axis=-1)

    res = ef_lstm_forward(x, params)
    out = jax.block_until_ready(res['M'])
    ref = ef_lstm_ref(x, params)

    assert out.shape == (B, O)
    assert jnp.allclose(out, ref, atol=1e-4, rtol=1e-4), (out, ref)
    print("KERNEL_OK")
</pallas_src>

<mosaic_0001>
module attributes {stable_mosaic.version = 11 : i64} {
  func.func @kernel(%arg0: memref<16x32xf32, #tpu.memory_space<vmem>>, %arg1: memref<16x1xf32, #tpu.memory_space<vmem>>, %arg2: memref<16x1xf32, #tpu.memory_space<vmem>>, %arg3: memref<32x128xf32, #tpu.memory_space<vmem>>, %arg4: memref<32x128xf32, #tpu.memory_space<vmem>>, %arg5: memref<1x128xf32, #tpu.memory_space<vmem>>, %arg6: memref<32x128xf32, #tpu.memory_space<vmem>>, %arg7: memref<32x128xf32, #tpu.memory_space<vmem>>, %arg8: memref<1x128xf32, #tpu.memory_space<vmem>>, %arg9: memref<32x32xf32, #tpu.memory_space<vmem>>, %arg10: memref<1x32xf32, #tpu.memory_space<vmem>>, %arg11: memref<32x1xf32, #tpu.memory_space<vmem>>, %arg12: memref<1x1xf32, #tpu.memory_space<vmem>>, %arg13: memref<2x1xf32, #tpu.memory_space<vmem>>) attributes {dimension_semantics = [], scalar_prefetch = 0 : i64, scratch_operands = 0 : i64, tpu.core_type = #tpu.core_type<tc>} {
    %c0 = arith.constant 0 : index
    %c0_0 = arith.constant 0 : index
    %0 = vector.load %arg0[%c0, %c0_0] : memref<16x32xf32, #tpu.memory_space<vmem>>, vector<16x32xf32>
    %c0_1 = arith.constant 0 : index
    %c0_2 = arith.constant 0 : index
    %1 = vector.load %arg1[%c0_1, %c0_2] : memref<16x1xf32, #tpu.memory_space<vmem>>, vector<16x1xf32>
    %2 = vector.broadcast %1 : vector<16x1xf32> to vector<16x32xf32>
    %3 = arith.mulf %0, %2 : vector<16x32xf32>
    %c0_3 = arith.constant 0 : index
    %c0_4 = arith.constant 0 : index
    %4 = vector.load %arg2[%c0_3, %c0_4] : memref<16x1xf32, #tpu.memory_space<vmem>>, vector<16x1xf32>
    %5 = vector.broadcast %4 : vector<16x1xf32> to vector<16x32xf32>
    %6 = arith.addf %3, %5 : vector<16x32xf32>
    %c0_5 = arith.constant 0 : index
    %c0_6 = arith.constant 0 : index
    %7 = vector.load %arg4[%c0_5, %c0_6] : memref<32x128xf32, #tpu.memory_space<vmem>>, vector<32x128xf32>
    %c0_7 = arith.constant 0 : index
    %c0_8 = arith.constant 0 : index
    %8 = vector.load %arg5[%c0_7, %c0_8] : memref<1x128xf32, #tpu.memory_space<vmem>>, vector<1x128xf32>
    %c0_9 = arith.constant 0 : index
    %c0_10 = arith.constant 0 : index
    %9 = vector.load %arg3[%c0_9, %c0_10] : memref<32x128xf32, #tpu.memory_space<vmem>>, vector<32x128xf32>
    %cst = arith.constant dense<0.000000e+00> : vector<16x128xf32>
    %10 = tpu.matmul %6, %9, %cst {dimension_numbers = #tpu.dot_dimension_numbers<[1], [0], [0], [1], [0, 0, 1, 1], [], []>} : vector<16x32xf32>, vector<32x128xf32>, vector<16x128xf32> -> vector<16x128xf32>
    %11 = vector.broadcast %8 : vector<1x128xf32> to vector<16x128xf32>
    %12 = arith.addf %10, %11 : vector<16x128xf32>
    %cst_11 = arith.constant 0.000000e+00 : f32
    %13 = vector.broadcast %cst_11 : f32 to vector<2x32xf32>
    %cst_12 = arith.constant 0.000000e+00 : f32
    %14 = vector.broadcast %cst_12 : f32 to vector<2x32xf32>
    %15 = vector.extract_strided_slice %12 {offsets = [0, 0], sizes = [2, 128], strides = [1, 1]} : vector<16x128xf32> to vector<2x128xf32>
    %cst_13 = arith.constant dense<0.000000e+00> : vector<2x128xf32>
    %16 = tpu.matmul %13, %7, %cst_13 {dimension_numbers = #tpu.dot_dimension_numbers<[1], [0], [0], [1], [0, 0, 1, 1], [], []>} : vector<2x32xf32>, vector<32x128xf32>, vector<2x128xf32> -> vector<2x128xf32>
    %17 = arith.addf %15, %16 : vector<2x128xf32>
    %18 = arith.negf %17 : vector<2x128xf32>
    %19 = math.exp %18 : vector<2x128xf32>
    %cst_14 = arith.constant 1.000000e+00 : f32
    %20 = vector.broadcast %cst_14 : f32 to vector<2x128xf32>
    %21 = arith.addf %20, %19 : vector<2x128xf32>
    %22 = arith.divf %20, %21 : vector<2x128xf32>
    %23 = math.tanh %17 : vector<2x128xf32>
    %24 = vector.extract_strided_slice %22 {offsets = [0, 0], sizes = [2, 32], strides = [1, 1]} : vector<2x128xf32> to vector<2x32xf32>
    %25 = vector.extract_strided_slice %22 {offsets = [0, 32], sizes = [2, 32], strides = [1, 1]} : vector<2x128xf32> to vector<2x32xf32>
    %26 = vector.extract_strided_slice %23 {offsets = [0, 64], sizes = [2, 32], strides = [1, 1]} : vector<2x128xf32> to vector<2x32xf32>
    %27 = vector.extract_strided_slice %22 {offsets = [0, 96], sizes = [2, 32], strides = [1, 1]} : vector<2x128xf32> to vector<2x32xf32>
    %28 = arith.mulf %25, %14 : vector<2x32xf32>
    %29 = arith.mulf %24, %26 : vector<2x32xf32>
    %30 = arith.addf %28, %29 : vector<2x32xf32>
    %31 = math.tanh %30 : vector<2x32xf32>
    %32 = arith.mulf %27, %31 : vector<2x32xf32>
    %33 = vector.extract_strided_slice %12 {offsets = [2, 0], sizes = [2, 128], strides = [1, 1]} : vector<16x128xf32> to vector<2x128xf32>
    %cst_15 = arith.constant dense<0.000000e+00> : vector<2x128xf32>
    %34 = tpu.matmul %32, %7, %cst_15 {dimension_numbers = #tpu.dot_dimension_numbers<[1], [0], [0], [1], [0, 0, 1, 1], [], []>} : vector<2x32xf32>, vector<32x128xf32>, vector<2x128xf32> -> vector<2x128xf32>
    %35 = arith.addf %33, %34 : vector<2x128xf32>
    %36 = arith.negf %35 : vector<2x128xf32>
    %37 = math.exp %36 : vector<2x128xf32>
    %cst_16 = arith.constant 1.000000e+00 : f32
    %38 = vector.broadcast %cst_16 : f32 to vector<2x128xf32>
    %39 = arith.addf %38, %37 : vector<2x128xf32>
    %40 = arith.divf %38, %39 : vector<2x128xf32>
    %41 = math.tanh %35 : vector<2x128xf32>
    %42 = vector.extract_strided_slice %40 {offsets = [0, 0], sizes = [2, 32], strides = [1, 1]} : vector<2x128xf32> to vector<2x32xf32>
    %43 = vector.extract_strided_slice %40 {offsets = [0, 32], sizes = [2, 32], strides = [1, 1]} : vector<2x128xf32> to vector<2x32xf32>
    %44 = vector.extract_strided_slice %41 {offsets = [0, 64], sizes = [2, 32], strides = [1, 1]} : vector<2x128xf32> to vector<2x32xf32>
    %45 = vector.extract_strided_slice %40 {offsets = [0, 96], sizes = [2, 32], strides = [1, 1]} : vector<2x128xf32> to vector<2x32xf32>
    %46 = arith.mulf %43, %30 : vector<2x32xf32>
    %47 = arith.mulf %42, %44 : vector<2x32xf32>
    %48 = arith.addf %46, %47 : vector<2x32xf32>
    %49 = math.tanh %48 : vector<2x32xf32>
    %50 = arith.mulf %45, %49 : vector<2x32xf32>
    %51 = vector.extract_strided_slice %12 {offsets = [4, 0], sizes = [2, 128], strides = [1, 1]} : vector<16x128xf32> to vector<2x128xf32>
    %cst_17 = arith.constant dense<0.000000e+00> : vector<2x128xf32>
    %52 = tpu.matmul %50, %7, %cst_17 {dimension_numbers = #tpu.dot_dimension_numbers<[1], [0], [0], [1], [0, 0, 1, 1], [], []>} : vector<2x32xf32>, vector<32x128xf32>, vector<2x128xf32> -> vector<2x128xf32>
    %53 = arith.addf %51, %52 : vector<2x128xf32>
    %54 = arith.negf %53 : vector<2x128xf32>
    %55 = math.exp %54 : vector<2x128xf32>
    %cst_18 = arith.constant 1.000000e+00 : f32
    %56 = vector.broadcast %cst_18 : f32 to vector<2x128xf32>
    %57 = arith.addf %56, %55 : vector<2x128xf32>
    %58 = arith.divf %56, %57 : vector<2x128xf32>
    %59 = math.tanh %53 : vector<2x128xf32>
    %60 = vector.extract_strided_slice %58 {offsets = [0, 0], sizes = [2, 32], strides = [1, 1]} : vector<2x128xf32> to vector<2x32xf32>
    %61 = vector.extract_strided_slice %58 {offsets = [0, 32], sizes = [2, 32], strides = [1, 1]} : vector<2x128xf32> to vector<2x32xf32>
    %62 = vector.extract_strided_slice %59 {offsets = [0, 64], sizes = [2, 32], strides = [1, 1]} : vector<2x128xf32> to vector<2x32xf32>
    %63 = vector.extract_strided_slice %58 {offsets = [0, 96], sizes = [2, 32], strides = [1, 1]} : vector<2x128xf32> to vector<2x32xf32>
    %64 = arith.mulf %61, %48 : vector<2x32xf32>
    %65 = arith.mulf %60, %62 : vector<2x32xf32>
    %66 = arith.addf %64, %65 : vector<2x32xf32>
    %67 = math.tanh %66 : vector<2x32xf32>
    %68 = arith.mulf %63, %67 : vector<2x32xf32>
    %69 = vector.extract_strided_slice %12 {offsets = [6, 0], sizes = [2, 128], strides = [1, 1]} : vector<16x128xf32> to vector<2x128xf32>
    %cst_19 = arith.constant dense<0.000000e+00> : vector<2x128xf32>
    %70 = tpu.matmul %68, %7, %cst_19 {dimension_numbers = #tpu.dot_dimension_numbers<[1], [0], [0], [1], [0, 0, 1, 1], [], []>} : vector<2x32xf32>, vector<32x128xf32>, vector<2x128xf32> -> vector<2x128xf32>
    %71 = arith.addf %69, %70 : vector<2x128xf32>
    %72 = arith.negf %71 : vector<2x128xf32>
    %73 = math.exp %72 : vector<2x128xf32>
    %cst_20 = arith.constant 1.000000e+00 : f32
    %74 = vector.broadcast %cst_20 : f32 to vector<2x128xf32>
    %75 = arith.addf %74, %73 : vector<2x128xf32>
    %76 = arith.divf %74, %75 : vector<2x128xf32>
    %77 = math.tanh %71 : vector<2x128xf32>
    %78 = vector.extract_strided_slice %76 {offsets = [0, 0], sizes = [2, 32], strides = [1, 1]} : vector<2x128xf32> to vector<2x32xf32>
    %79 = vector.extract_strided_slice %76 {offsets = [0, 32], sizes = [2, 32], strides = [1, 1]} : vector<2x128xf32> to vector<2x32xf32>
    %80 = vector.extract_strided_slice %77 {offsets = [0, 64], sizes = [2, 32], strides = [1, 1]} : vector<2x128xf32> to vector<2x32xf32>
    %81 = vector.extract_strided_slice %76 {offsets = [0, 96], sizes = [2, 32], strides = [1, 1]} : vector<2x128xf32> to vector<2x32xf32>
    %82 = arith.mulf %79, %66 : vector<2x32xf32>
    %83 = arith.mulf %78, %80 : vector<2x32xf32>
    %84 = arith.addf %82, %83 : vector<2x32xf32>
    %85 = math.tanh %84 : vector<2x32xf32>
    %86 = arith.mulf %81, %85 : vector<2x32xf32>
    %87 = vector.extract_strided_slice %12 {offsets = [8, 0], sizes = [2, 128], strides = [1, 1]} : vector<16x128xf32> to vector<2x128xf32>
    %cst_21 = arith.constant dense<0.000000e+00> : vector<2x128xf32>
    %88 = tpu.matmul %86, %7, %cst_21 {dimension_numbers = #tpu.dot_dimension_numbers<[1], [0], [0], [1], [0, 0, 1, 1], [], []>} : vector<2x32xf32>, vector<32x128xf32>, vector<2x128xf32> -> vector<2x128xf32>
    %89 = arith.addf %87, %88 : vector<2x128xf32>
    %90 = arith.negf %89 : vector<2x128xf32>
    %91 = math.exp %90 : vector<2x128xf32>
    %cst_22 = arith.constant 1.000000e+00 : f32
    %92 = vector.broadcast %cst_22 : f32 to vector<2x128xf32>
    %93 = arith.addf %92, %91 : vector<2x128xf32>
    %94 = arith.divf %92, %93 : vector<2x128xf32>
    %95 = math.tanh %89 : vector<2x128xf32>
    %96 = vector.extract_strided_slice %94 {offsets = [0, 0], sizes = [2, 32], strides = [1, 1]} : vector<2x128xf32> to vector<2x32xf32>
    %97 = vector.extract_strided_slice %94 {offsets = [0, 32], sizes = [2, 32], strides = [1, 1]} : vector<2x128xf32> to vector<2x32xf32>
    %98 = vector.extract_strided_slice %95 {offsets = [0, 64], sizes = [2, 32], strides = [1, 1]} : vector<2x128xf32> to vector<2x32xf32>
    %99 = vector.extract_strided_slice %94 {offsets = [0, 96], sizes = [2, 32], strides = [1, 1]} : vector<2x128xf32> to vector<2x32xf32>
    %100 = arith.mulf %97, %84 : vector<2x32xf32>
    %101 = arith.mulf %96, %98 : vector<2x32xf32>
    %102 = arith.addf %100, %101 : vector<2x32xf32>
    %103 = math.tanh %102 : vector<2x32xf32>
    %104 = arith.mulf %99, %103 : vector<2x32xf32>
    %105 = vector.extract_strided_slice %12 {offsets = [10, 0], sizes = [2, 128], strides = [1, 1]} : vector<16x128xf32> to vector<2x128xf32>
    %cst_23 = arith.constant dense<0.000000e+00> : vector<2x128xf32>
    %106 = tpu.matmul %104, %7, %cst_23 {dimension_numbers = #tpu.dot_dimension_numbers<[1], [0], [0], [1], [0, 0, 1, 1], [], []>} : vector<2x32xf32>, vector<32x128xf32>, vector<2x128xf32> -> vector<2x128xf32>
    %107 = arith.addf %105, %106 : vector<2x128xf32>
    %108 = arith.negf %107 : vector<2x128xf32>
    %109 = math.exp %108 : vector<2x128xf32>
    %cst_24 = arith.constant 1.000000e+00 : f32
    %110 = vector.broadcast %cst_24 : f32 to vector<2x128xf32>
    %111 = arith.addf %110, %109 : vector<2x128xf32>
    %112 = arith.divf %110, %111 : vector<2x128xf32>
    %113 = math.tanh %107 : vector<2x128xf32>
    %114 = vector.extract_strided_slice %112 {offsets = [0, 0], sizes = [2, 32], strides = [1, 1]} : vector<2x128xf32> to vector<2x32xf32>
    %115 = vector.extract_strided_slice %112 {offsets = [0, 32], sizes = [2, 32], strides = [1, 1]} : vector<2x128xf32> to vector<2x32xf32>
    %116 = vector.extract_strided_slice %113 {offsets = [0, 64], sizes = [2, 32], strides = [1, 1]} : vector<2x128xf32> to vector<2x32xf32>
    %117 = vector.extract_strided_slice %112 {offsets = [0, 96], sizes = [2, 32], strides = [1, 1]} : vector<2x128xf32> to vector<2x32xf32>
    %118 = arith.mulf %115, %102 : vector<2x32xf32>
    %119 = arith.mulf %114, %116 : vector<2x32xf32>
    %120 = arith.addf %118, %119 : vector<2x32xf32>
    %121 = math.tanh %120 : vector<2x32xf32>
    %122 = arith.mulf %117, %121 : vector<2x32xf32>
    %123 = vector.extract_strided_slice %12 {offsets = [12, 0], sizes = [2, 128], strides = [1, 1]} : vector<16x128xf32> to vector<2x128xf32>
    %cst_25 = arith.constant dense<0.000000e+00> : vector<2x128xf32>
    %124 = tpu.matmul %122, %7, %cst_25 {dimension_numbers = #tpu.dot_dimension_numbers<[1], [0], [0], [1], [0, 0, 1, 1], [], []>} : vector<2x32xf32>, vector<32x128xf32>, vector<2x128xf32> -> vector<2x128xf32>
    %125 = arith.addf %123, %124 : vector<2x128xf32>
    %126 = arith.negf %125 : vector<2x128xf32>
    %127 = math.exp %126 : vector<2x128xf32>
    %cst_26 = arith.constant 1.000000e+00 : f32
    %128 = vector.broadcast %cst_26 : f32 to vector<2x128xf32>
    %129 = arith.addf %128, %127 : vector<2x128xf32>
    %130 = arith.divf %128, %129 : vector<2x128xf32>
    %131 = math.tanh %125 : vector<2x128xf32>
    %132 = vector.extract_strided_slice %130 {offsets = [0, 0], sizes = [2, 32], strides = [1, 1]} : vector<2x128xf32> to vector<2x32xf32>
    %133 = vector.extract_strided_slice %130 {offsets = [0, 32], sizes = [2, 32], strides = [1, 1]} : vector<2x128xf32> to vector<2x32xf32>
    %134 = vector.extract_strided_slice %131 {offsets = [0, 64], sizes = [2, 32], strides = [1, 1]} : vector<2x128xf32> to vector<2x32xf32>
    %135 = vector.extract_strided_slice %130 {offsets = [0, 96], sizes = [2, 32], strides = [1, 1]} : vector<2x128xf32> to vector<2x32xf32>
    %136 = arith.mulf %133, %120 : vector<2x32xf32>
    %137 = arith.mulf %132, %134 : vector<2x32xf32>
    %138 = arith.addf %136, %137 : vector<2x32xf32>
    %139 = math.tanh %138 : vector<2x32xf32>
    %140 = arith.mulf %135, %139 : vector<2x32xf32>
    %141 = vector.extract_strided_slice %12 {offsets = [14, 0], sizes = [2, 128], strides = [1, 1]} : vector<16x128xf32> to vector<2x128xf32>
    %cst_27 = arith.constant dense<0.000000e+00> : vector<2x128xf32>
    %142 = tpu.matmul %140, %7, %cst_27 {dimension_numbers = #tpu.dot_dimension_numbers<[1], [0], [0], [1], [0, 0, 1, 1], [], []>} : vector<2x32xf32>, vector<32x128xf32>, vector<2x128xf32> -> vector<2x128xf32>
    %143 = arith.addf %141, %142 : vector<2x128xf32>
    %144 = arith.negf %143 : vector<2x128xf32>
    %145 = math.exp %144 : vector<2x128xf32>
    %cst_28 = arith.constant 1.000000e+00 : f32
    %146 = vector.broadcast %cst_28 : f32 to vector<2x128xf32>
    %147 = arith.addf %146, %145 : vector<2x128xf32>
    %148 = arith.divf %146, %147 : vector<2x128xf32>
    %149 = math.tanh %143 : vector<2x128xf32>
    %150 = vector.extract_strided_slice %148 {offsets = [0, 0], sizes = [2, 32], strides = [1, 1]} : vector<2x128xf32> to vector<2x32xf32>
    %151 = vector.extract_strided_slice %148 {offsets = [0, 32], sizes = [2, 32], strides = [1, 1]} : vector<2x128xf32> to vector<2x32xf32>
    %152 = vector.extract_strided_slice %149 {offsets = [0, 64], sizes = [2, 32], strides = [1, 1]} : vector<2x128xf32> to vector<2x32xf32>
    %153 = vector.extract_strided_slice %148 {offsets = [0, 96], sizes = [2, 32], strides = [1, 1]} : vector<2x128xf32> to vector<2x32xf32>
    %154 = arith.mulf %151, %138 : vector<2x32xf32>
    %155 = arith.mulf %150, %152 : vector<2x32xf32>
    %156 = arith.addf %154, %155 : vector<2x32xf32>
    %157 = math.tanh %156 : vector<2x32xf32>
    %158 = arith.mulf %153, %157 : vector<2x32xf32>
    %c0_29 = arith.constant 0 : index
    %c0_30 = arith.constant 0 : index
    %159 = vector.load %arg7[%c0_29, %c0_30] : memref<32x128xf32, #tpu.memory_space<vmem>>, vector<32x128xf32>
    %c0_31 = arith.constant 0 : index
    %c0_32 = arith.constant 0 : index
    %160 = vector.load %arg8[%c0_31, %c0_32] : memref<1x128xf32, #tpu.memory_space<vmem>>, vector<1x128xf32>
    %c0_33 = arith.constant 0 : index
    %c0_34 = arith.constant 0 : index
    %161 = vector.load %arg6[%c0_33, %c0_34] : memref<32x128xf32, #tpu.memory_space<vmem>>, vector<32x128xf32>
    %cst_35 = arith.constant 0.000000e+00 : f32
    %162 = vector.broadcast %cst_35 : f32 to vector<2x32xf32>
    %cst_36 = arith.constant 0.000000e+00 : f32
    %163 = vector.broadcast %cst_36 : f32 to vector<2x32xf32>
    %cst_37 = arith.constant dense<0.000000e+00> : vector<2x128xf32>
    %164 = tpu.matmul %32, %161, %cst_37 {dimension_numbers = #tpu.dot_dimension_numbers<[1], [0], [0], [1], [0, 0, 1, 1], [], []>} : vector<2x32xf32>, vector<32x128xf32>, vector<2x128xf32> -> vector<2x128xf32>
    %165 = vector.broadcast %160 : vector<1x128xf32> to vector<2x128xf32>
    %166 = arith.addf %164, %165 : vector<2x128xf32>
    %cst_38 = arith.constant dense<0.000000e+00> : vector<2x128xf32>
    %167 = tpu.matmul %162, %159, %cst_38 {dimension_numbers = #tpu.dot_dimension_numbers<[1], [0], [0], [1], [0, 0, 1, 1], [], []>} : vector<2x32xf32>, vector<32x128xf32>, vector<2x128xf32> -> vector<2x128xf32>
    %168 = arith.addf %166, %167 : vector<2x128xf32>
    %169 = arith.negf %168 : vector<2x128xf32>
    %170 = math.exp %169 : vector<2x128xf32>
    %cst_39 = arith.constant 1.000000e+00 : f32
    %171 = vector.broadcast %cst_39 : f32 to vector<2x128xf32>
    %172 = arith.addf %171, %170 : vector<2x128xf32>
    %173 = arith.divf %171, %172 : vector<2x128xf32>
    %174 = math.tanh %168 : vector<2x128xf32>
    %175 = vector.extract_strided_slice %173 {offsets = [0, 0], sizes = [2, 32], strides = [1, 1]} : vector<2x128xf32> to vector<2x32xf32>
    %176 = vector.extract_strided_slice %173 {offsets = [0, 32], sizes = [2, 32], strides = [1, 1]} : vector<2x128xf32> to vector<2x32xf32>
    %177 = vector.extract_strided_slice %174 {offsets = [0, 64], sizes = [2, 32], strides = [1, 1]} : vector<2x128xf32> to vector<2x32xf32>
    %178 = vector.extract_strided_slice %173 {offsets = [0, 96], sizes = [2, 32], strides = [1, 1]} : vector<2x128xf32> to vector<2x32xf32>
    %179 = arith.mulf %176, %163 : vector<2x32xf32>
    %180 = arith.mulf %175, %177 : vector<2x32xf32>
    %181 = arith.addf %179, %180 : vector<2x32xf32>
    %182 = math.tanh %181 : vector<2x32xf32>
    %183 = arith.mulf %178, %182 : vector<2x32xf32>
    %cst_40 = arith.constant dense<0.000000e+00> : vector<2x128xf32>
    %184 = tpu.matmul %50, %161, %cst_40 {dimension_numbers = #tpu.dot_dimension_numbers<[1], [0], [0], [1], [0, 0, 1, 1], [], []>} : vector<2x32xf32>, vector<32x128xf32>, vector<2x128xf32> -> vector<2x128xf32>
    %185 = vector.broadcast %160 : vector<1x128xf32> to vector<2x128xf32>
    %186 = arith.addf %184, %185 : vector<2x128xf32>
    %cst_41 = arith.constant dense<0.000000e+00> : vector<2x128xf32>
    %187 = tpu.matmul %183, %159, %cst_41 {dimension_numbers = #tpu.dot_dimension_numbers<[1], [0], [0], [1], [0, 0, 1, 1], [], []>} : vector<2x32xf32>, vector<32x128xf32>, vector<2x128xf32> -> vector<2x128xf32>
    %188 = arith.addf %186, %187 : vector<2x128xf32>
    %189 = arith.negf %188 : vector<2x128xf32>
    %190 = math.exp %189 : vector<2x128xf32>
    %cst_42 = arith.constant 1.000000e+00 : f32
    %191 = vector.broadcast %cst_42 : f32 to vector<2x128xf32>
    %192 = arith.addf %191, %190 : vector<2x128xf32>
    %193 = arith.divf %191, %192 : vector<2x128xf32>
    %194 = math.tanh %188 : vector<2x128xf32>
    %195 = vector.extract_strided_slice %193 {offsets = [0, 0], sizes = [2, 32], strides = [1, 1]} : vector<2x128xf32> to vector<2x32xf32>
    %196 = vector.extract_strided_slice %193 {offsets = [0, 32], sizes = [2, 32], strides = [1, 1]} : vector<2x128xf32> to vector<2x32xf32>
    %197 = vector.extract_strided_slice %194 {offsets = [0, 64], sizes = [2, 32], strides = [1, 1]} : vector<2x128xf32> to vector<2x32xf32>
    %198 = vector.extract_strided_slice %193 {offsets = [0, 96], sizes = [2, 32], strides = [1, 1]} : vector<2x128xf32> to vector<2x32xf32>
    %199 = arith.mulf %196, %181 : vector<2x32xf32>
    %200 = arith.mulf %195, %197 : vector<2x32xf32>
    %201 = arith.addf %199, %200 : vector<2x32xf32>
    %202 = math.tanh %201 : vector<2x32xf32>
    %203 = arith.mulf %198, %202 : vector<2x32xf32>
    %cst_43 = arith.constant dense<0.000000e+00> : vector<2x128xf32>
    %204 = tpu.matmul %68, %161, %cst_43 {dimension_numbers = #tpu.dot_dimension_numbers<[1], [0], [0], [1], [0, 0, 1, 1], [], []>} : vector<2x32xf32>, vector<32x128xf32>, vector<2x128xf32> -> vector<2x128xf32>
    %205 = vector.broadcast %160 : vector<1x128xf32> to vector<2x128xf32>
    %206 = arith.addf %204, %205 : vector<2x128xf32>
    %cst_44 = arith.constant dense<0.000000e+00> : vector<2x128xf32>
    %207 = tpu.matmul %203, %159, %cst_44 {dimension_numbers = #tpu.dot_dimension_numbers<[1], [0], [0], [1], [0, 0, 1, 1], [], []>} : vector<2x32xf32>, vector<32x128xf32>, vector<2x128xf32> -> vector<2x128xf32>
    %208 = arith.addf %206, %207 : vector<2x128xf32>
    %209 = arith.negf %208 : vector<2x128xf32>
    %210 = math.exp %209 : vector<2x128xf32>
    %cst_45 = arith.constant 1.000000e+00 : f32
    %211 = vector.broadcast %cst_45 : f32 to vector<2x128xf32>
    %212 = arith.addf %211, %210 : vector<2x128xf32>
    %213 = arith.divf %211, %212 : vector<2x128xf32>
    %214 = math.tanh %208 : vector<2x128xf32>
    %215 = vector.extract_strided_slice %213 {offsets = [0, 0], sizes = [2, 32], strides = [1, 1]} : vector<2x128xf32> to vector<2x32xf32>
    %216 = vector.extract_strided_slice %213 {offsets = [0, 32], sizes = [2, 32], strides = [1, 1]} : vector<2x128xf32> to vector<2x32xf32>
    %217 = vector.extract_strided_slice %214 {offsets = [0, 64], sizes = [2, 32], strides = [1, 1]} : vector<2x128xf32> to vector<2x32xf32>
    %218 = vector.extract_strided_slice %213 {offsets = [0, 96], sizes = [2, 32], strides = [1, 1]} : vector<2x128xf32> to vector<2x32xf32>
    %219 = arith.mulf %216, %201 : vector<2x32xf32>
    %220 = arith.mulf %215, %217 : vector<2x32xf32>
    %221 = arith.addf %219, %220 : vector<2x32xf32>
    %222 = math.tanh %221 : vector<2x32xf32>
    %223 = arith.mulf %218, %222 : vector<2x32xf32>
    %cst_46 = arith.constant dense<0.000000e+00> : vector<2x128xf32>
    %224 = tpu.matmul %86, %161, %cst_46 {dimension_numbers = #tpu.dot_dimension_numbers<[1], [0], [0], [1], [0, 0, 1, 1], [], []>} : vector<2x32xf32>, vector<32x128xf32>, vector<2x128xf32> -> vector<2x128xf32>
    %225 = vector.broadcast %160 : vector<1x128xf32> to vector<2x128xf32>
    %226 = arith.addf %224, %225 : vector<2x128xf32>
    %cst_47 = arith.constant dense<0.000000e+00> : vector<2x128xf32>
    %227 = tpu.matmul %223, %159, %cst_47 {dimension_numbers = #tpu.dot_dimension_numbers<[1], [0], [0], [1], [0, 0, 1, 1], [], []>} : vector<2x32xf32>, vector<32x128xf32>, vector<2x128xf32> -> vector<2x128xf32>
    %228 = arith.addf %226, %227 : vector<2x128xf32>
    %229 = arith.negf %228 : vector<2x128xf32>
    %230 = math.exp %229 : vector<2x128xf32>
    %cst_48 = arith.constant 1.000000e+00 : f32
    %231 = vector.broadcast %cst_48 : f32 to vector<2x128xf32>
    %232 = arith.addf %231, %230 : vector<2x128xf32>
    %233 = arith.divf %231, %232 : vector<2x128xf32>
    %234 = math.tanh %228 : vector<2x128xf32>
    %235 = vector.extract_strided_slice %233 {offsets = [0, 0], sizes = [2, 32], strides = [1, 1]} : vector<2x128xf32> to vector<2x32xf32>
    %236 = vector.extract_strided_slice %233 {offsets = [0, 32], sizes = [2, 32], strides = [1, 1]} : vector<2x128xf32> to vector<2x32xf32>
    %237 = vector.extract_strided_slice %234 {offsets = [0, 64], sizes = [2, 32], strides = [1, 1]} : vector<2x128xf32> to vector<2x32xf32>
    %238 = vector.extract_strided_slice %233 {offsets = [0, 96], sizes = [2, 32], strides = [1, 1]} : vector<2x128xf32> to vector<2x32xf32>
    %239 = arith.mulf %236, %221 : vector<2x32xf32>
    %240 = arith.mulf %235, %237 : vector<2x32xf32>
    %241 = arith.addf %239, %240 : vector<2x32xf32>
    %242 = math.tanh %241 : vector<2x32xf32>
    %243 = arith.mulf %238, %242 : vector<2x32xf32>
    %cst_49 = arith.constant dense<0.000000e+00> : vector<2x128xf32>
    %244 = tpu.matmul %104, %161, %cst_49 {dimension_numbers = #tpu.dot_dimension_numbers<[1], [0], [0], [1], [0, 0, 1, 1], [], []>} : vector<2x32xf32>, vector<32x128xf32>, vector<2x128xf32> -> vector<2x128xf32>
    %245 = vector.broadcast %160 : vector<1x128xf32> to vector<2x128xf32>
    %246 = arith.addf %244, %245 : vector<2x128xf32>
    %cst_50 = arith.constant dense<0.000000e+00> : vector<2x128xf32>
    %247 = tpu.matmul %243, %159, %cst_50 {dimension_numbers = #tpu.dot_dimension_numbers<[1], [0], [0], [1], [0, 0, 1, 1], [], []>} : vector<2x32xf32>, vector<32x128xf32>, vector<2x128xf32> -> vector<2x128xf32>
    %248 = arith.addf %246, %247 : vector<2x128xf32>
    %249 = arith.negf %248 : vector<2x128xf32>
    %250 = math.exp %249 : vector<2x128xf32>
    %cst_51 = arith.constant 1.000000e+00 : f32
    %251 = vector.broadcast %cst_51 : f32 to vector<2x128xf32>
    %252 = arith.addf %251, %250 : vector<2x128xf32>
    %253 = arith.divf %251, %252 : vector<2x128xf32>
    %254 = math.tanh %248 : vector<2x128xf32>
    %255 = vector.extract_strided_slice %253 {offsets = [0, 0], sizes = [2, 32], strides = [1, 1]} : vector<2x128xf32> to vector<2x32xf32>
    %256 = vector.extract_strided_slice %253 {offsets = [0, 32], sizes = [2, 32], strides = [1, 1]} : vector<2x128xf32> to vector<2x32xf32>
    %257 = vector.extract_strided_slice %254 {offsets = [0, 64], sizes = [2, 32], strides = [1, 1]} : vector<2x128xf32> to vector<2x32xf32>
    %258 = vector.extract_strided_slice %253 {offsets = [0, 96], sizes = [2, 32], strides = [1, 1]} : vector<2x128xf32> to vector<2x32xf32>
    %259 = arith.mulf %256, %241 : vector<2x32xf32>
    %260 = arith.mulf %255, %257 : vector<2x32xf32>
    %261 = arith.addf %259, %260 : vector<2x32xf32>
    %262 = math.tanh %261 : vector<2x32xf32>
    %263 = arith.mulf %258, %262 : vector<2x32xf32>
    %cst_52 = arith.constant dense<0.000000e+00> : vector<2x128xf32>
    %264 = tpu.matmul %122, %161, %cst_52 {dimension_numbers = #tpu.dot_dimension_numbers<[1], [0], [0], [1], [0, 0, 1, 1], [], []>} : vector<2x32xf32>, vector<32x128xf32>, vector<2x128xf32> -> vector<2x128xf32>
    %265 = vector.broadcast %160 : vector<1x128xf32> to vector<2x128xf32>
    %266 = arith.addf %264, %265 : vector<2x128xf32>
    %cst_53 = arith.constant dense<0.000000e+00> : vector<2x128xf32>
    %267 = tpu.matmul %263, %159, %cst_53 {dimension_numbers = #tpu.dot_dimension_numbers<[1], [0], [0], [1], [0, 0, 1, 1], [], []>} : vector<2x32xf32>, vector<32x128xf32>, vector<2x128xf32> -> vector<2x128xf32>
    %268 = arith.addf %266, %267 : vector<2x128xf32>
    %269 = arith.negf %268 : vector<2x128xf32>
    %270 = math.exp %269 : vector<2x128xf32>
    %cst_54 = arith.constant 1.000000e+00 : f32
    %271 = vector.broadcast %cst_54 : f32 to vector<2x128xf32>
    %272 = arith.addf %271, %270 : vector<2x128xf32>
    %273 = arith.divf %271, %272 : vector<2x128xf32>
    %274 = math.tanh %268 : vector<2x128xf32>
    %275 = vector.extract_strided_slice %273 {offsets = [0, 0], sizes = [2, 32], strides = [1, 1]} : vector<2x128xf32> to vector<2x32xf32>
    %276 = vector.extract_strided_slice %273 {offsets = [0, 32], sizes = [2, 32], strides = [1, 1]} : vector<2x128xf32> to vector<2x32xf32>
    %277 = vector.extract_strided_slice %274 {offsets = [0, 64], sizes = [2, 32], strides = [1, 1]} : vector<2x128xf32> to vector<2x32xf32>
    %278 = vector.extract_strided_slice %273 {offsets = [0, 96], sizes = [2, 32], strides = [1, 1]} : vector<2x128xf32> to vector<2x32xf32>
    %279 = arith.mulf %276, %261 : vector<2x32xf32>
    %280 = arith.mulf %275, %277 : vector<2x32xf32>
    %281 = arith.addf %279, %280 : vector<2x32xf32>
    %282 = math.tanh %281 : vector<2x32xf32>
    %283 = arith.mulf %278, %282 : vector<2x32xf32>
    %cst_55 = arith.constant dense<0.000000e+00> : vector<2x128xf32>
    %284 = tpu.matmul %140, %161, %cst_55 {dimension_numbers = #tpu.dot_dimension_numbers<[1], [0], [0], [1], [0, 0, 1, 1], [], []>} : vector<2x32xf32>, vector<32x128xf32>, vector<2x128xf32> -> vector<2x128xf32>
    %285 = vector.broadcast %160 : vector<1x128xf32> to vector<2x128xf32>
    %286 = arith.addf %284, %285 : vector<2x128xf32>
    %cst_56 = arith.constant dense<0.000000e+00> : vector<2x128xf32>
    %287 = tpu.matmul %283, %159, %cst_56 {dimension_numbers = #tpu.dot_dimension_numbers<[1], [0], [0], [1], [0, 0, 1, 1], [], []>} : vector<2x32xf32>, vector<32x128xf32>, vector<2x128xf32> -> vector<2x128xf32>
    %288 = arith.addf %286, %287 : vector<2x128xf32>
    %289 = arith.negf %288 : vector<2x128xf32>
    %290 = math.exp %289 : vector<2x128xf32>
    %cst_57 = arith.constant 1.000000e+00 : f32
    %291 = vector.broadcast %cst_57 : f32 to vector<2x128xf32>
    %292 = arith.addf %291, %290 : vector<2x128xf32>
    %293 = arith.divf %291, %292 : vector<2x128xf32>
    %294 = math.tanh %288 : vector<2x128xf32>
    %295 = vector.extract_strided_slice %293 {offsets = [0, 0], sizes = [2, 32], strides = [1, 1]} : vector<2x128xf32> to vector<2x32xf32>
    %296 = vector.extract_strided_slice %293 {offsets = [0, 32], sizes = [2, 32], strides = [1, 1]} : vector<2x128xf32> to vector<2x32xf32>
    %297 = vector.extract_strided_slice %294 {offsets = [0, 64], sizes = [2, 32], strides = [1, 1]} : vector<2x128xf32> to vector<2x32xf32>
    %298 = vector.extract_strided_slice %293 {offsets = [0, 96], sizes = [2, 32], strides = [1, 1]} : vector<2x128xf32> to vector<2x32xf32>
    %299 = arith.mulf %296, %281 : vector<2x32xf32>
    %300 = arith.mulf %295, %297 : vector<2x32xf32>
    %301 = arith.addf %299, %300 : vector<2x32xf32>
    %302 = math.tanh %301 : vector<2x32xf32>
    %303 = arith.mulf %298, %302 : vector<2x32xf32>
    %cst_58 = arith.constant dense<0.000000e+00> : vector<2x128xf32>
    %304 = tpu.matmul %158, %161, %cst_58 {dimension_numbers = #tpu.dot_dimension_numbers<[1], [0], [0], [1], [0, 0, 1, 1], [], []>} : vector<2x32xf32>, vector<32x128xf32>, vector<2x128xf32> -> vector<2x128xf32>
    %305 = vector.broadcast %160 : vector<1x128xf32> to vector<2x128xf32>
    %306 = arith.addf %304, %305 : vector<2x128xf32>
    %cst_59 = arith.constant dense<0.000000e+00> : vector<2x128xf32>
    %307 = tpu.matmul %303, %159, %cst_59 {dimension_numbers = #tpu.dot_dimension_numbers<[1], [0], [0], [1], [0, 0, 1, 1], [], []>} : vector<2x32xf32>, vector<32x128xf32>, vector<2x128xf32> -> vector<2x128xf32>
    %308 = arith.addf %306, %307 : vector<2x128xf32>
    %309 = arith.negf %308 : vector<2x128xf32>
    %310 = math.exp %309 : vector<2x128xf32>
    %cst_60 = arith.constant 1.000000e+00 : f32
    %311 = vector.broadcast %cst_60 : f32 to vector<2x128xf32>
    %312 = arith.addf %311, %310 : vector<2x128xf32>
    %313 = arith.divf %311, %312 : vector<2x128xf32>
    %314 = math.tanh %308 : vector<2x128xf32>
    %315 = vector.extract_strided_slice %313 {offsets = [0, 0], sizes = [2, 32], strides = [1, 1]} : vector<2x128xf32> to vector<2x32xf32>
    %316 = vector.extract_strided_slice %313 {offsets = [0, 32], sizes = [2, 32], strides = [1, 1]} : vector<2x128xf32> to vector<2x32xf32>
    %317 = vector.extract_strided_slice %314 {offsets = [0, 64], sizes = [2, 32], strides = [1, 1]} : vector<2x128xf32> to vector<2x32xf32>
    %318 = vector.extract_strided_slice %313 {offsets = [0, 96], sizes = [2, 32], strides = [1, 1]} : vector<2x128xf32> to vector<2x32xf32>
    %319 = arith.mulf %316, %301 : vector<2x32xf32>
    %320 = arith.mulf %315, %317 : vector<2x32xf32>
    %321 = arith.addf %319, %320 : vector<2x32xf32>
    %322 = math.tanh %321 : vector<2x32xf32>
    %323 = arith.mulf %318, %322 : vector<2x32xf32>
    %c0_61 = arith.constant 0 : index
    %c0_62 = arith.constant 0 : index
    %324 = vector.load %arg9[%c0_61, %c0_62] : memref<32x32xf32, #tpu.memory_space<vmem>>, vector<32x32xf32>
    %cst_63 = arith.constant dense<0.000000e+00> : vector<2x32xf32>
    %325 = tpu.matmul %323, %324, %cst_63 {dimension_numbers = #tpu.dot_dimension_numbers<[1], [0], [0], [1], [0, 0, 1, 1], [], []>} : vector<2x32xf32>, vector<32x32xf32>, vector<2x32xf32> -> vector<2x32xf32>
    %c0_64 = arith.constant 0 : index
    %c0_65 = arith.constant 0 : index
    %326 = vector.load %arg10[%c0_64, %c0_65] : memref<1x32xf32, #tpu.memory_space<vmem>>, vector<1x32xf32>
    %327 = vector.broadcast %326 : vector<1x32xf32> to vector<2x32xf32>
    %328 = arith.addf %325, %327 : vector<2x32xf32>
    %cst_66 = arith.constant 0.000000e+00 : f32
    %329 = vector.broadcast %cst_66 : f32 to vector<2x32xf32>
    %330 = arith.maximumf %328, %329 : vector<2x32xf32>
    %c0_67 = arith.constant 0 : index
    %c0_68 = arith.constant 0 : index
    %331 = vector.load %arg11[%c0_67, %c0_68] : memref<32x1xf32, #tpu.memory_space<vmem>>, vector<32x1xf32>
    %cst_69 = arith.constant dense<0.000000e+00> : vector<2x1xf32>
    %332 = tpu.matmul %330, %331, %cst_69 {dimension_numbers = #tpu.dot_dimension_numbers<[1], [0], [0], [1], [0, 0, 1, 1], [], []>} : vector<2x32xf32>, vector<32x1xf32>, vector<2x1xf32> -> vector<2x1xf32>
    %c0_70 = arith.constant 0 : index
    %c0_71 = arith.constant 0 : index
    %333 = vector.load %arg12[%c0_70, %c0_71] : memref<1x1xf32, #tpu.memory_space<vmem>>, vector<1x1xf32>
    %334 = vector.broadcast %333 : vector<1x1xf32> to vector<2x1xf32>
    %335 = arith.addf %332, %334 : vector<2x1xf32>
    %c0_72 = arith.constant 0 : index
    %c0_73 = arith.constant 0 : index
    %336 = vector.load %arg13[%c0_72, %c0_73] : memref<2x1xf32, #tpu.memory_space<vmem>>, vector<2x1xf32>
    tpu.vector_store %arg13[%c0_72, %c0_73], %335 {strides = array<i32>} : memref<2x1xf32, #tpu.memory_space<vmem>>, vector<2x1xf32>,
    return
  }
}

</mosaic_0001>

<llo_original>
// kernel: tpu_custom_call.1
$region0: #{tpu_custom_call.1}
  #allocation0 [shape = 'u32[]', space=smem, size = 0x4, offset = 0x4, fixed_abs, tag = 'smem constant byte address 0x4 - core index']
  #allocation1 [shape = 'u32[72,128]{1,0:T(1,128)}', space=vmem, size = 0x9000, scoped, tag = 'internal scratch']
  #allocation2 [shape = 'f32[1,1]{1,0:T(1,128)S(1)}', space=vmem, size = 0x200, scoped, tag = 'scoped memory for tpu_custom_call.1']
  %s0 = inlined_call_operand.hbm [shape: f32[16,32], index: 0, kind: input, shape index: {}]
  %s1 = inlined_call_operand.vmem [shape: f32[16,1], index: 1, kind: input, shape index: {}]
  %s2 = inlined_call_operand.vmem [shape: f32[16,1], index: 2, kind: input, shape index: {}]
  %s3 = inlined_call_operand.vmem [shape: f32[32,128], index: 3, kind: input, shape index: {}]
  %s4 = inlined_call_operand.vmem [shape: f32[32,128], index: 4, kind: input, shape index: {}]
  %s5 = inlined_call_operand.vmem [shape: f32[1,128], index: 5, kind: input, shape index: {}]
  %s6 = inlined_call_operand.hbm [shape: f32[32,128], index: 6, kind: input, shape index: {}]
  %s7 = inlined_call_operand.hbm [shape: f32[32,128], index: 7, kind: input, shape index: {}]
  %s8 = inlined_call_operand.vmem [shape: f32[1,128], index: 8, kind: input, shape index: {}]
  %s9 = inlined_call_operand.hbm [shape: f32[32,32], index: 9, kind: input, shape index: {}]
  %s10 = inlined_call_operand.vmem [shape: f32[1,32], index: 10, kind: input, shape index: {}]
  %s11 = inlined_call_operand.vmem [shape: f32[32,1], index: 11, kind: input, shape index: {}]
  %s12 = inlined_call_operand.<no memory space> [shape: f32[1,1], index: 12, kind: input, shape index: {}]
  %s13 = inlined_call_operand.vmem [shape: f32[2,1], index: 13, kind: output, shape index: {}]
  %s14 = sld [smem:[#allocation0]]
  $region78: #{tpu_custom_call.1} parent=0
    _
  %s16 = ssub.s32 1, %s14
  %s17 = scalar_select 0, %s16, %s14
  %v18 = vstv %s12
  %19 = vst [vmem:[#allocation2] sm:$0x1] %v18
  $region1: #{tpu_custom_call.1} parent=0
    #allocation3 [shape = 'u8[8192]{0}', space=vmem, size = 0x2000, scoped, tag = 'input window, operand 0, single buffered']
    #allocation4 [shape = 's32[1]{0}', space=sflag, size = 0x4, scoped, tag = 'scoped memory for tpu_custom_call.1']
    #allocation5 [shape = 'u8[16384]{0}', space=vmem, size = 0x4000, scoped, tag = 'input window, operand 6, single buffered']
    #allocation6 [shape = 's32[1]{0}', space=sflag, size = 0x4, scoped, tag = 'scoped memory for tpu_custom_call.1']
    #allocation7 [shape = 'u8[16384]{0}', space=vmem, size = 0x4000, scoped, tag = 'input window, operand 7, single buffered']
    #allocation8 [shape = 'u8[16384]{0}', space=vmem, size = 0x4000, scoped, tag = 'input window, operand 9, single buffered']
    #allocation9 [shape = 's32[1]{0}', space=sflag, size = 0x4, scoped, tag = 'scoped memory for tpu_custom_call.1']
    %20 = vsyncpa [#allocation4], 0
    %21 = vsyncpa [#allocation6], 0
    %22 = vsyncpa [#allocation9], 0
    // Predicated region
    $region2: #{tpu_custom_call.1} parent=1 // pred_check
      _
    $region3: #{tpu_custom_call.1} parent=1 // pred_check_branch
      %24 = sbr.rel (0) target = $region5
    $region4: #{tpu_custom_call.1} parent=1 // pred_region
      %26 = vsyncadd [#allocation4], 0
      %s27 = sshll.u32 %s0, 4
      %s28 = int_to_ptr.hbm [resolvable:$true] %s27
      %s29 = sshll.u32 [#allocation3], 4
      %s30 = int_to_ptr.vmem [resolvable:$true] %s29
      %35 = dma.hbm_to_vmem [thread:$0]  %s28, 256, %s30, [#allocation4], 128, 128, 8
    $region5: #{tpu_custom_call.1} parent=1 // pred_fallthru
      _
    // Predicated region
    $region6: #{tpu_custom_call.1} parent=1 // pred_check
      _
    $region7: #{tpu_custom_call.1} parent=1 // pred_check_branch
      %37 = sbr.rel (0) target = $region9
    $region8: #{tpu_custom_call.1} parent=1 // pred_region
      _
    $region9: #{tpu_custom_call.1} parent=1 // pred_fallthru
      _
    // Predicated region
    $region10: #{tpu_custom_call.1} parent=1 // pred_check
      _
    $region11: #{tpu_custom_call.1} parent=1 // pred_check_branch
      %39 = sbr.rel (0) target = $region13
    $region12: #{tpu_custom_call.1} parent=1 // pred_region
      _
    $region13: #{tpu_custom_call.1} parent=1 // pred_fallthru
      _
    // Predicated region
    $region14: #{tpu_custom_call.1} parent=1 // pred_check
      _
    $region15: #{tpu_custom_call.1} parent=1 // pred_check_branch
      %41 = sbr.rel (0) target = $region17
    $region16: #{tpu_custom_call.1} parent=1 // pred_region
      _
    $region17: #{tpu_custom_call.1} parent=1 // pred_fallthru
      _
    // Predicated region
    $region18: #{tpu_custom_call.1} parent=1 // pred_check
      _
    $region19: #{tpu_custom_call.1} parent=1 // pred_check_branch
      %43 = sbr.rel (0) target = $region21
    $region20: #{tpu_custom_call.1} parent=1 // pred_region
      _
    $region21: #{tpu_custom_call.1} parent=1 // pred_fallthru
      _
    // Predicated region
    $region22: #{tpu_custom_call.1} parent=1 // pred_check
      _
    $region23: #{tpu_custom_call.1} parent=1 // pred_check_branch
      %45 = sbr.rel (0) target = $region25
    $region24: #{tpu_custom_call.1} parent=1 // pred_region
      _
    $region25: #{tpu_custom_call.1} parent=1 // pred_fallthru
      _
    // Predicated region
    $region26: #{tpu_custom_call.1} parent=1 // pred_check
      _
    $region27: #{tpu_custom_call.1} parent=1 // pred_check_branch
      %47 = sbr.rel (0) target = $region29
    $region28: #{tpu_custom_call.1} parent=1 // pred_region
      %49 = vsyncadd [#allocation6], 0
      %s50 = sshll.u32 %s6, 4
      %s51 = int_to_ptr.hbm [resolvable:$true] %s50
      %s52 = sshll.u32 [#allocation5], 4
      %s53 = int_to_ptr.vmem [resolvable:$true] %s52
      %58 = dma.hbm_to_vmem [thread:$0]  %s51, 512, %s53, [#allocation6], 128, 128, 8
    $region29: #{tpu_custom_call.1} parent=1 // pred_fallthru
      _
    // Predicated region
    $region30: #{tpu_custom_call.1} parent=1 // pred_check
      _
    $region31: #{tpu_custom_call.1} parent=1 // pred_check_branch
      %60 = sbr.rel (0) target = $region33
    $region32: #{tpu_custom_call.1} parent=1 // pred_region
      %62 = vsyncadd [#allocation6], 0
      %s63 = sshll.u32 %s7, 4
      %s64 = int_to_ptr.hbm [resolvable:$true] %s63
      %s65 = sshll.u32 [#allocation7], 4
      %s66 = int_to_ptr.vmem [resolvable:$true] %s65
      %71 = dma.hbm_to_vmem [thread:$0]  %s64, 512, %s66, [#allocation6], 128, 128, 8
    $region33: #{tpu_custom_call.1} parent=1 // pred_fallthru
      _
    // Predicated region
    $region34: #{tpu_custom_call.1} parent=1 // pred_check
      _
    $region35: #{tpu_custom_call.1} parent=1 // pred_check_branch
      %73 = sbr.rel (0) target = $region37
    $region36: #{tpu_custom_call.1} parent=1 // pred_region
      _
    $region37: #{tpu_custom_call.1} parent=1 // pred_fallthru
      _
    // Predicated region
    $region38: #{tpu_custom_call.1} parent=1 // pred_check
      _
    $region39: #{tpu_custom_call.1} parent=1 // pred_check_branch
      %75 = sbr.rel (0) target = $region41
    $region40: #{tpu_custom_call.1} parent=1 // pred_region
      %77 = vsyncadd [#allocation9], 0
      %s78 = sshll.u32 %s9, 4
      %s79 = int_to_ptr.hbm [resolvable:$true] %s78
      %s80 = sshll.u32 [#allocation8], 4
      %s81 = int_to_ptr.vmem [resolvable:$true] %s80
      %86 = dma.hbm_to_vmem [thread:$0]  %s79, 512, %s81, [#allocation9], 128, 128, 8
    $region41: #{tpu_custom_call.1} parent=1 // pred_fallthru
      _
    // Predicated region
    $region42: #{tpu_custom_call.1} parent=1 // pred_check
      _
    $region43: #{tpu_custom_call.1} parent=1 // pred_check_branch
      %88 = sbr.rel (0) target = $region45
    $region44: #{tpu_custom_call.1} parent=1 // pred_region
      _
    $region45: #{tpu_custom_call.1} parent=1 // pred_fallthru
      _
    // Predicated region
    $region46: #{tpu_custom_call.1} parent=1 // pred_check
      _
    $region47: #{tpu_custom_call.1} parent=1 // pred_check_branch
      %90 = sbr.rel (0) target = $region49
    $region48: #{tpu_custom_call.1} parent=1 // pred_region
      _
    $region49: #{tpu_custom_call.1} parent=1 // pred_fallthru
      _
    // Predicated region
    $region50: #{tpu_custom_call.1} parent=1 // pred_check
      _
    $region51: #{tpu_custom_call.1} parent=1 // pred_check_branch
      %92 = sbr.rel (0) target = $region53
    $region52: #{tpu_custom_call.1} parent=1 // pred_region
      _
    $region53: #{tpu_custom_call.1} parent=1 // pred_fallthru
      _
    // Predicated region
    $region54: #{tpu_custom_call.1} parent=1 // pred_check
      _
    $region55: #{tpu_custom_call.1} parent=1 // pred_check_branch
      %94 = sbr.rel (0) target = $region57
    $region56: #{tpu_custom_call.1} parent=1 // pred_region
      %96 = dma.done [#allocation4], 256
    $region57: #{tpu_custom_call.1} parent=1 // pred_fallthru
      _
    // Predicated region
    $region58: #{tpu_custom_call.1} parent=1 // pred_check
      _
    $region59: #{tpu_custom_call.1} parent=1 // pred_check_branch
      %98 = sbr.rel (0) target = $region61
    $region60: #{tpu_custom_call.1} parent=1 // pred_region
      %100 = dma.done [#allocation6], 512
    $region61: #{tpu_custom_call.1} parent=1 // pred_fallthru
      _
    // Predicated region
    $region62: #{tpu_custom_call.1} parent=1 // pred_check
      _
    $region63: #{tpu_custom_call.1} parent=1 // pred_check_branch
      %102 = sbr.rel (0) target = $region65
    $region64: #{tpu_custom_call.1} parent=1 // pred_region
      %104 = dma.done [#allocation6], 512
    $region65: #{tpu_custom_call.1} parent=1 // pred_fallthru
      _
    // Predicated region
    $region66: #{tpu_custom_call.1} parent=1 // pred_check
      _
    $region67: #{tpu_custom_call.1} parent=1 // pred_check_branch
      %106 = sbr.rel (0) target = $region69
    $region68: #{tpu_custom_call.1} parent=1 // pred_region
      %108 = dma.done [#allocation9], 512
    $region69: #{tpu_custom_call.1} parent=1 // pred_fallthru
      _
    %v109 = vld [vmem:[#allocation3] sm:$0xff]
    %v110 = vld [vmem:[#allocation3 + $0x8] sm:$0xff]
    %v111 = vld [vmem:[%s1] sm:$0xff]
    %v112 = vld [vmem:[%s1 + $0x8] sm:$0xff]
    %114 = vset.pattern.permute.xlu0 0
    %115 = vperm.xlu0 %114, %v111
    %v116 = vpop.permute.xlu0 %115
    %119 = vset.pattern.permute.xlu0 0
    %120 = vperm.xlu0 %119, %v112
    %v121 = vpop.permute.xlu0 %120
    %v123 = vmul.f32 %v109, %v116
    %v124 = vmul.f32 %v110, %v121
    %v125 = vld [vmem:[%s2] sm:$0xff]
    %v126 = vld [vmem:[%s2 + $0x8] sm:$0xff]
    %128 = vset.pattern.permute.xlu0 0
    %129 = vperm.xlu0 %128, %v125
    %v130 = vpop.permute.xlu0 %129
    %133 = vset.pattern.permute.xlu0 0
    %134 = vperm.xlu0 %133, %v126
    %v135 = vpop.permute.xlu0 %134
    %v137 = vadd.f32 %v123, %v130
    %v138 = vadd.f32 %v124, %v135
    %v139 = vld [vmem:[%s4] sm:$0xff]
    %v140 = vld [vmem:[%s4 + $0x8] sm:$0xff]
    %v141 = vld [vmem:[%s4 + $0x10] sm:$0xff]
    %v142 = vld [vmem:[%s4 + $0x18] sm:$0xff]
    %v143 = vld [vmem:[%s5] sm:$0x1]
    %v144 = vld [vmem:[%s3] sm:$0xff]
    %v145 = vld [vmem:[%s3 + $0x8] sm:$0xff]
    %v146 = vld [vmem:[%s3 + $0x10] sm:$0xff]
    %v147 = vld [vmem:[%s3 + $0x18] sm:$0xff]
    %v149 = vperm.slane %v143, 0
    %vm151 = vcmask 261120
    %v153 = vsel %vm151, %v137, 0
    %v156 = vsel %vm151, %v138, 0
    %158 = vmatpush.msra.mxu0 0.0
    %159 = vmatpush.msra.mxu0 0.0
    %160 = vmatpush.msra.mxu0 0.0
    %161 = vmatpush.msra.mxu0 0.0
    %162 = vmatpush.msra.mxu0 0.0
    %163 = vmatpush.msra.mxu0 0.0
    %164 = vmatpush.msra.mxu0 0.0
    %165 = vmatpush.msra.mxu0 0.0
    %166 = vmatpush.msra.mxu0 0.0
    %167 = vmatpush.msra.mxu0 0.0
    %168 = vmatpush.msra.mxu0 0.0
    %169 = vmatpush.msra.mxu0 0.0
    %170 = vmatpush.msra.mxu0 %v147
    %171 = vmatpush.msra.mxu0 %v146
    %172 = vmatpush.msra.mxu0 %v145
    %173 = vmatpush.msra.mxu0 %v144
    %174 = vmatmul.f32.gmra.mxu0 %v153
    %v175 = vpop.f32.mrf.mxu0
    %v176 = vadd.f32 %v149, %v175
    %177 = vmatmul.f32.gmra.mxu0 %v156
    %v178 = vpop.f32.mrf.mxu0
    %v179 = vadd.f32 %v149, %v178
    %180 = vdwg.mxu0
    %v182 = vsel %vm151, 0.0, 0
    %184 = vmatpush.msra.mxu0 0.0
    %185 = vmatpush.msra.mxu0 0.0
    %186 = vmatpush.msra.mxu0 0.0
    %187 = vmatpush.msra.mxu0 0.0
    %188 = vmatpush.msra.mxu0 0.0
    %189 = vmatpush.msra.mxu0 0.0
    %190 = vmatpush.msra.mxu0 0.0
    %191 = vmatpush.msra.mxu0 0.0
    %192 = vmatpush.msra.mxu0 0.0
    %193 = vmatpush.msra.mxu0 0.0
    %194 = vmatpush.msra.mxu0 0.0
    %195 = vmatpush.msra.mxu0 0.0
    %196 = vmatpush.msra.mxu0 %v142
    %197 = vmatpush.msra.mxu0 %v141
    %198 = vmatpush.msra.mxu0 %v140
    %199 = vmatpush.msra.mxu0 %v139
    %200 = vmatmul.f32.gmra.mxu0 %v182
    %v201 = vpop.f32.mrf.mxu0
    %v202 = vadd.f32 0.0, %v201
    %203 = vdwg.mxu0
    %v204 = vadd.f32 %v176, %v202
    %v205 = vxor.u32 %v204, 2147483648
    %v206 = vmul.f32 %v205, 1.442695
    %v207 = vpow.pop %v206
    %v208 = vadd.f32 %v207, 1.0
    %v209 = vrcp.pop %v208
    %v210 = vmul.f32 %v208, %v209
    %v211 = vsub.f32 1.0, %v210
    %v212 = vmul.f32 %v209, %v211
    %v213 = vadd.f32 %v209, %v212
    %vm214 = vweird.f32 %v208
    %vm215 = vweird.f32 %v209
    %vm216 = vmor %vm214, %vm215
    %v217 = vsel %vm216, %v209, %v213
    %v218 = vand.u32 2147483647, %v208
    %vm219 = vcmp.eq.f32.partialorder %v218, 8.507059e+37
    %v220 = vand.u32 %v208, 2147483648
    %v221 = vor.u32 1.1754944e-38, %v220
    %v222 = vsel %vm219, %v221, %v217
    %v223 = vmul.f32 1.0, %v222
    %v224 = vtanh.pop %v204
    %v225 = vmul.f32 %v223, 0.0
    %227 = vrot.lane.b32.xlu0 %v224, 64
    %v228 = vpop.permute.xlu0 %227
    %v230 = vmul.f32 %v223, %v228
    %232 = vrot.lane.b32.xlu0 %v230, 32
    %v233 = vpop.permute.xlu0 %232
    %v235 = vadd.f32 %v225, %v233
    %v236 = vtanh.pop %v235
    %238 = vrot.lane.b32.xlu0 %v236, 64
    %v239 = vpop.permute.xlu0 %238
    %v241 = vmul.f32 %v223, %v239
    %243 = vrot.lane.b32.xlu0 %v241, 32
    %v244 = vpop.permute.xlu0 %243
    %v245 = vsel %vm151, %v244, 0
    %247 = vmatpush.msra.mxu0 0.0
    %248 = vmatpush.msra.mxu0 0.0
    %249 = vmatpush.msra.mxu0 0.0
    %250 = vmatpush.msra.mxu0 0.0
    %251 = vmatpush.msra.mxu0 0.0
    %252 = vmatpush.msra.mxu0 0.0
    %253 = vmatpush.msra.mxu0 0.0
    %254 = vmatpush.msra.mxu0 0.0
    %255 = vmatpush.msra.mxu0 0.0
    %256 = vmatpush.msra.mxu0 0.0
    %257 = vmatpush.msra.mxu0 0.0
    %258 = vmatpush.msra.mxu0 0.0
    %259 = vmatpush.msra.mxu0 %v142
    %260 = vmatpush.msra.mxu0 %v141
    %261 = vmatpush.msra.mxu0 %v140
    %262 = vmatpush.msra.mxu0 %v139
    %263 = vmatmul.f32.gmra.mxu0 %v245
    %v264 = vpop.f32.mrf.mxu0
    %v265 = vadd.f32 0.0, %v264
    %266 = vdwg.mxu0
    %v268 = vrot.slane %v265, 6
    %v270 = vadd.f32 %v176, %v268
    %v271 = vxor.u32 %v270, 2147483648
    %v272 = vmul.f32 %v271, 1.442695
    %v273 = vpow.pop %v272
    %v274 = vadd.f32 %v273, 1.0
    %v275 = vrcp.pop %v274
    %v276 = vmul.f32 %v274, %v275
    %v277 = vsub.f32 1.0, %v276
    %v278 = vmul.f32 %v275, %v277
    %v279 = vadd.f32 %v275, %v278
    %vm280 = vweird.f32 %v274
    %vm281 = vweird.f32 %v275
    %vm282 = vmor %vm280, %vm281
    %v283 = vsel %vm282, %v275, %v279
    %v284 = vand.u32 2147483647, %v274
    %vm285 = vcmp.eq.f32.partialorder %v284, 8.507059e+37
    %v286 = vand.u32 %v274, 2147483648
    %v287 = vor.u32 1.1754944e-38, %v286
    %v288 = vsel %vm285, %v287, %v283
    %v289 = vmul.f32 1.0, %v288
    %v290 = vtanh.pop %v270
    %v292 = vrot.slane %v235, 6
    %v294 = vmul.f32 %v289, %v292
    %296 = vrot.lane.b32.xlu0 %v290, 64
    %v297 = vpop.permute.xlu0 %296
    %v299 = vmul.f32 %v289, %v297
    %301 = vrot.lane.b32.xlu0 %v299, 32
    %v302 = vpop.permute.xlu0 %301
    %v304 = vadd.f32 %v294, %v302
    %v305 = vtanh.pop %v304
    %307 = vrot.lane.b32.xlu0 %v305, 64
    %v308 = vpop.permute.xlu0 %307
    %v310 = vmul.f32 %v289, %v308
    %v312 = vrot.slane %v310, 2
    %313 = vrot.lane.b32.xlu0 %v312, 32
    %v314 = vpop.permute.xlu0 %313
    %v315 = vsel %vm151, %v314, 0
    %317 = vmatpush.msra.mxu0 0.0
    %318 = vmatpush.msra.mxu0 0.0
    %319 = vmatpush.msra.mxu0 0.0
    %320 = vmatpush.msra.mxu0 0.0
    %321 = vmatpush.msra.mxu0 0.0
    %322 = vmatpush.msra.mxu0 0.0
    %323 = vmatpush.msra.mxu0 0.0
    %324 = vmatpush.msra.mxu0 0.0
    %325 = vmatpush.msra.mxu0 0.0
    %326 = vmatpush.msra.mxu0 0.0
    %327 = vmatpush.msra.mxu0 0.0
    %328 = vmatpush.msra.mxu0 0.0
    %329 = vmatpush.msra.mxu0 %v142
    %330 = vmatpush.msra.mxu0 %v141
    %331 = vmatpush.msra.mxu0 %v140
    %332 = vmatpush.msra.mxu0 %v139
    %333 = vmatmul.f32.gmra.mxu0 %v315
    %v334 = vpop.f32.mrf.mxu0
    %v335 = vadd.f32 0.0, %v334
    %336 = vdwg.mxu0
    %v338 = vrot.slane %v335, 4
    %v340 = vadd.f32 %v176, %v338
    %v341 = vxor.u32 %v340, 2147483648
    %v342 = vmul.f32 %v341, 1.442695
    %v343 = vpow.pop %v342
    %v344 = vadd.f32 %v343, 1.0
    %v345 = vrcp.pop %v344
    %v346 = vmul.f32 %v344, %v345
    %v347 = vsub.f32 1.0, %v346
    %v348 = vmul.f32 %v345, %v347
    %v349 = vadd.f32 %v345, %v348
    %vm350 = vweird.f32 %v344
    %vm351 = vweird.f32 %v345
    %vm352 = vmor %vm350, %vm351
    %v353 = vsel %vm352, %v345, %v349
    %v354 = vand.u32 2147483647, %v344
    %vm355 = vcmp.eq.f32.partialorder %v354, 8.507059e+37
    %v356 = vand.u32 %v344, 2147483648
    %v357 = vor.u32 1.1754944e-38, %v356
    %v358 = vsel %vm355, %v357, %v353
    %v359 = vmul.f32 1.0, %v358
    %v360 = vtanh.pop %v340
    %v362 = vrot.slane %v304, 6
    %v364 = vmul.f32 %v359, %v362
    %366 = vrot.lane.b32.xlu0 %v360, 64
    %v367 = vpop.permute.xlu0 %366
    %v369 = vmul.f32 %v359, %v367
    %371 = vrot.lane.b32.xlu0 %v369, 32
    %v372 = vpop.permute.xlu0 %371
    %v374 = vadd.f32 %v364, %v372
    %v375 = vtanh.pop %v374
    %377 = vrot.lane.b32.xlu0 %v375, 64
    %v378 = vpop.permute.xlu0 %377
    %v380 = vmul.f32 %v359, %v378
    %v382 = vrot.slane %v380, 4
    %383 = vrot.lane.b32.xlu0 %v382, 32
    %v384 = vpop.permute.xlu0 %383
    %v385 = vsel %vm151, %v384, 0
    %387 = vmatpush.msra.mxu0 0.0
    %388 = vmatpush.msra.mxu0 0.0
    %389 = vmatpush.msra.mxu0 0.0
    %390 = vmatpush.msra.mxu0 0.0
    %391 = vmatpush.msra.mxu0 0.0
    %392 = vmatpush.msra.mxu0 0.0
    %393 = vmatpush.msra.mxu0 0.0
    %394 = vmatpush.msra.mxu0 0.0
    %395 = vmatpush.msra.mxu0 0.0
    %396 = vmatpush.msra.mxu0 0.0
    %397 = vmatpush.msra.mxu0 0.0
    %398 = vmatpush.msra.mxu0 0.0
    %399 = vmatpush.msra.mxu0 %v142
    %400 = vmatpush.msra.mxu0 %v141
    %401 = vmatpush.msra.mxu0 %v140
    %402 = vmatpush.msra.mxu0 %v139
    %403 = vmatmul.f32.gmra.mxu0 %v385
    %v404 = vpop.f32.mrf.mxu0
    %v405 = vadd.f32 0.0, %v404
    %406 = vdwg.mxu0
    %v408 = vrot.slane %v405, 2
    %v410 = vadd.f32 %v176, %v408
    %v411 = vxor.u32 %v410, 2147483648
    %v412 = vmul.f32 %v411, 1.442695
    %v413 = vpow.pop %v412
    %v414 = vadd.f32 %v413, 1.0
    %v415 = vrcp.pop %v414
    %v416 = vmul.f32 %v414, %v415
    %v417 = vsub.f32 1.0, %v416
    %v418 = vmul.f32 %v415, %v417
    %v419 = vadd.f32 %v415, %v418
    %vm420 = vweird.f32 %v414
    %vm421 = vweird.f32 %v415
    %vm422 = vmor %vm420, %vm421
    %v423 = vsel %vm422, %v415, %v419
    %v424 = vand.u32 2147483647, %v414
    %vm425 = vcmp.eq.f32.partialorder %v424, 8.507059e+37
    %v426 = vand.u32 %v414, 2147483648
    %v427 = vor.u32 1.1754944e-38, %v426
    %v428 = vsel %vm425, %v427, %v423
    %v429 = vmul.f32 1.0, %v428
    %v430 = vtanh.pop %v410
    %v432 = vrot.slane %v374, 6
    %v434 = vmul.f32 %v429, %v432
    %436 = vrot.lane.b32.xlu0 %v430, 64
    %v437 = vpop.permute.xlu0 %436
    %v439 = vmul.f32 %v429, %v437
    %441 = vrot.lane.b32.xlu0 %v439, 32
    %v442 = vpop.permute.xlu0 %441
    %v444 = vadd.f32 %v434, %v442
    %v445 = vtanh.pop %v444
    %447 = vrot.lane.b32.xlu0 %v445, 64
    %v448 = vpop.permute.xlu0 %447
    %v450 = vmul.f32 %v429, %v448
    %v452 = vrot.slane %v450, 6
    %453 = vrot.lane.b32.xlu0 %v452, 32
    %v454 = vpop.permute.xlu0 %453
    %v455 = vsel %vm151, %v454, 0
    %457 = vmatpush.msra.mxu0 0.0
    %458 = vmatpush.msra.mxu0 0.0
    %459 = vmatpush.msra.mxu0 0.0
    %460 = vmatpush.msra.mxu0 0.0
    %461 = vmatpush.msra.mxu0 0.0
    %462 = vmatpush.msra.mxu0 0.0
    %463 = vmatpush.msra.mxu0 0.0
    %464 = vmatpush.msra.mxu0 0.0
    %465 = vmatpush.msra.mxu0 0.0
    %466 = vmatpush.msra.mxu0 0.0
    %467 = vmatpush.msra.mxu0 0.0
    %468 = vmatpush.msra.mxu0 0.0
    %469 = vmatpush.msra.mxu0 %v142
    %470 = vmatpush.msra.mxu0 %v141
    %471 = vmatpush.msra.mxu0 %v140
    %472 = vmatpush.msra.mxu0 %v139
    %473 = vmatmul.f32.gmra.mxu0 %v455
    %v474 = vpop.f32.mrf.mxu0
    %v475 = vadd.f32 0.0, %v474
    %476 = vdwg.mxu0
    %v477 = vadd.f32 %v179, %v475
    %v478 = vxor.u32 %v477, 2147483648
    %v479 = vmul.f32 %v478, 1.442695
    %v480 = vpow.pop %v479
    %v481 = vadd.f32 %v480, 1.0
    %v482 = vrcp.pop %v481
    %v483 = vmul.f32 %v481, %v482
    %v484 = vsub.f32 1.0, %v483
    %v485 = vmul.f32 %v482, %v484
    %v486 = vadd.f32 %v482, %v485
    %vm487 = vweird.f32 %v481
    %vm488 = vweird.f32 %v482
    %vm489 = vmor %vm487, %vm488
    %v490 = vsel %vm489, %v482, %v486
    %v491 = vand.u32 2147483647, %v481
    %vm492 = vcmp.eq.f32.partialorder %v491, 8.507059e+37
    %v493 = vand.u32 %v481, 2147483648
    %v494 = vor.u32 1.1754944e-38, %v493
    %v495 = vsel %vm492, %v494, %v490
    %v496 = vmul.f32 1.0, %v495
    %v497 = vtanh.pop %v477
    %v499 = vrot.slane %v444, 6
    %v501 = vmul.f32 %v496, %v499
    %503 = vrot.lane.b32.xlu0 %v497, 64
    %v504 = vpop.permute.xlu0 %503
    %v506 = vmul.f32 %v496, %v504
    %508 = vrot.lane.b32.xlu0 %v506, 32
    %v509 = vpop.permute.xlu0 %508
    %v511 = vadd.f32 %v501, %v509
    %v512 = vtanh.pop %v511
    %514 = vrot.lane.b32.xlu0 %v512, 64
    %v515 = vpop.permute.xlu0 %514
    %v517 = vmul.f32 %v496, %v515
    %519 = vrot.lane.b32.xlu0 %v517, 32
    %v520 = vpop.permute.xlu0 %519
    %v521 = vsel %vm151, %v520, 0
    %523 = vmatpush.msra.mxu0 0.0
    %524 = vmatpush.msra.mxu0 0.0
    %525 = vmatpush.msra.mxu0 0.0
    %526 = vmatpush.msra.mxu0 0.0
    %527 = vmatpush.msra.mxu0 0.0
    %528 = vmatpush.msra.mxu0 0.0
    %529 = vmatpush.msra.mxu0 0.0
    %530 = vmatpush.msra.mxu0 0.0
    %531 = vmatpush.msra.mxu0 0.0
    %532 = vmatpush.msra.mxu0 0.0
    %533 = vmatpush.msra.mxu0 0.0
    %534 = vmatpush.msra.mxu0 0.0
    %535 = vmatpush.msra.mxu0 %v142
    %536 = vmatpush.msra.mxu0 %v141
    %537 = vmatpush.msra.mxu0 %v140
    %538 = vmatpush.msra.mxu0 %v139
    %539 = vmatmul.f32.gmra.mxu0 %v521
    %v540 = vpop.f32.mrf.mxu0
    %v541 = vadd.f32 0.0, %v540
    %542 = vdwg.mxu0
    %v544 = vrot.slane %v541, 6
    %v546 = vadd.f32 %v179, %v544
    %v547 = vxor.u32 %v546, 2147483648
    %v548 = vmul.f32 %v547, 1.442695
    %v549 = vpow.pop %v548
    %v550 = vadd.f32 %v549, 1.0
    %v551 = vrcp.pop %v550
    %v552 = vmul.f32 %v550, %v551
    %v553 = vsub.f32 1.0, %v552
    %v554 = vmul.f32 %v551, %v553
    %v555 = vadd.f32 %v551, %v554
    %vm556 = vweird.f32 %v550
    %vm557 = vweird.f32 %v551
    %vm558 = vmor %vm556, %vm557
    %v559 = vsel %vm558, %v551, %v555
    %v560 = vand.u32 2147483647, %v550
    %vm561 = vcmp.eq.f32.partialorder %v560, 8.507059e+37
    %v562 = vand.u32 %v550, 2147483648
    %v563 = vor.u32 1.1754944e-38, %v562
    %v564 = vsel %vm561, %v563, %v559
    %v565 = vmul.f32 1.0, %v564
    %v566 = vtanh.pop %v546
    %v568 = vrot.slane %v511, 6
    %v570 = vmul.f32 %v565, %v568
    %572 = vrot.lane.b32.xlu0 %v566, 64
    %v573 = vpop.permute.xlu0 %572
    %v575 = vmul.f32 %v565, %v573
    %577 = vrot.lane.b32.xlu0 %v575, 32
    %v578 = vpop.permute.xlu0 %577
    %v580 = vadd.f32 %v570, %v578
    %v581 = vtanh.pop %v580
    %583 = vrot.lane.b32.xlu0 %v581, 64
    %v584 = vpop.permute.xlu0 %583
    %v586 = vmul.f32 %v565, %v584
    %v588 = vrot.slane %v586, 2
    %589 = vrot.lane.b32.xlu0 %v588, 32
    %v590 = vpop.permute.xlu0 %589
    %v591 = vsel %vm151, %v590, 0
    %593 = vmatpush.msra.mxu0 0.0
    %594 = vmatpush.msra.mxu0 0.0
    %595 = vmatpush.msra.mxu0 0.0
    %596 = vmatpush.msra.mxu0 0.0
    %597 = vmatpush.msra.mxu0 0.0
    %598 = vmatpush.msra.mxu0 0.0
    %599 = vmatpush.msra.mxu0 0.0
    %600 = vmatpush.msra.mxu0 0.0
    %601 = vmatpush.msra.mxu0 0.0
    %602 = vmatpush.msra.mxu0 0.0
    %603 = vmatpush.msra.mxu0 0.0
    %604 = vmatpush.msra.mxu0 0.0
    %605 = vmatpush.msra.mxu0 %v142
    %606 = vmatpush.msra.mxu0 %v141
    %607 = vmatpush.msra.mxu0 %v140
    %608 = vmatpush.msra.mxu0 %v139
    %609 = vmatmul.f32.gmra.mxu0 %v591
    %v610 = vpop.f32.mrf.mxu0
    %v611 = vadd.f32 0.0, %v610
    %612 = vdwg.mxu0
    %v614 = vrot.slane %v611, 4
    %v616 = vadd.f32 %v179, %v614
    %v617 = vxor.u32 %v616, 2147483648
    %v618 = vmul.f32 %v617, 1.442695
    %v619 = vpow.pop %v618
    %v620 = vadd.f32 %v619, 1.0
    %v621 = vrcp.pop %v620
    %v622 = vmul.f32 %v620, %v621
    %v623 = vsub.f32 1.0, %v622
    %v624 = vmul.f32 %v621, %v623
    %v625 = vadd.f32 %v621, %v624
    %vm626 = vweird.f32 %v620
    %vm627 = vweird.f32 %v621
    %vm628 = vmor %vm626, %vm627
    %v629 = vsel %vm628, %v621, %v625
    %v630 = vand.u32 2147483647, %v620
    %vm631 = vcmp.eq.f32.partialorder %v630, 8.507059e+37
    %v632 = vand.u32 %v620, 2147483648
    %v633 = vor.u32 1.1754944e-38, %v632
    %v634 = vsel %vm631, %v633, %v629
    %v635 = vmul.f32 1.0, %v634
    %v636 = vtanh.pop %v616
    %v638 = vrot.slane %v580, 6
    %v640 = vmul.f32 %v635, %v638
    %642 = vrot.lane.b32.xlu0 %v636, 64
    %v643 = vpop.permute.xlu0 %642
    %v645 = vmul.f32 %v635, %v643
    %647 = vrot.lane.b32.xlu0 %v645, 32
    %v648 = vpop.permute.xlu0 %647
    %v650 = vadd.f32 %v640, %v648
    %v651 = vtanh.pop %v650
    %653 = vrot.lane.b32.xlu0 %v651, 64
    %v654 = vpop.permute.xlu0 %653
    %v656 = vmul.f32 %v635, %v654
    %v658 = vrot.slane %v656, 4
    %659 = vrot.lane.b32.xlu0 %v658, 32
    %v660 = vpop.permute.xlu0 %659
    %v661 = vsel %vm151, %v660, 0
    %663 = vmatpush.msra.mxu0 0.0
    %664 = vmatpush.msra.mxu0 0.0
    %665 = vmatpush.msra.mxu0 0.0
    %666 = vmatpush.msra.mxu0 0.0
    %667 = vmatpush.msra.mxu0 0.0
    %668 = vmatpush.msra.mxu0 0.0
    %669 = vmatpush.msra.mxu0 0.0
    %670 = vmatpush.msra.mxu0 0.0
    %671 = vmatpush.msra.mxu0 0.0
    %672 = vmatpush.msra.mxu0 0.0
    %673 = vmatpush.msra.mxu0 0.0
    %674 = vmatpush.msra.mxu0 0.0
    %675 = vmatpush.msra.mxu0 %v142
    %676 = vmatpush.msra.mxu0 %v141
    %677 = vmatpush.msra.mxu0 %v140
    %678 = vmatpush.msra.mxu0 %v139
    %679 = vmatmul.f32.gmra.mxu0 %v661
    %v680 = vpop.f32.mrf.mxu0
    %v681 = vadd.f32 0.0, %v680
    %682 = vdwg.mxu0
    %v684 = vrot.slane %v681, 2
    %v686 = vadd.f32 %v179, %v684
    %v687 = vxor.u32 %v686, 2147483648
    %v688 = vmul.f32 %v687, 1.442695
    %v689 = vpow.pop %v688
    %v690 = vadd.f32 %v689, 1.0
    %v691 = vrcp.pop %v690
    %v692 = vmul.f32 %v690, %v691
    %v693 = vsub.f32 1.0, %v692
    %v694 = vmul.f32 %v691, %v693
    %v695 = vadd.f32 %v691, %v694
    %vm696 = vweird.f32 %v690
    %vm697 = vweird.f32 %v691
    %vm698 = vmor %vm696, %vm697
    %v699 = vsel %vm698, %v691, %v695
    %v700 = vand.u32 2147483647, %v690
    %vm701 = vcmp.eq.f32.partialorder %v700, 8.507059e+37
    %v702 = vand.u32 %v690, 2147483648
    %v703 = vor.u32 1.1754944e-38, %v702
    %v704 = vsel %vm701, %v703, %v699
    %v705 = vmul.f32 1.0, %v704
    %v706 = vtanh.pop %v686
    %v708 = vrot.slane %v650, 6
    %v710 = vmul.f32 %v705, %v708
    %712 = vrot.lane.b32.xlu0 %v706, 64
    %v713 = vpop.permute.xlu0 %712
    %v715 = vmul.f32 %v705, %v713
    %717 = vrot.lane.b32.xlu0 %v715, 32
    %v718 = vpop.permute.xlu0 %717
    %v720 = vadd.f32 %v710, %v718
    %v721 = vtanh.pop %v720
    %723 = vrot.lane.b32.xlu0 %v721, 64
    %v724 = vpop.permute.xlu0 %723
    %v726 = vmul.f32 %v705, %v724
    %v727 = vld [vmem:[#allocation7] sm:$0xff]
    %v728 = vld [vmem:[#allocation7 + $0x8] sm:$0xff]
    %v729 = vld [vmem:[#allocation7 + $0x10] sm:$0xff]
    %v730 = vld [vmem:[#allocation7 + $0x18] sm:$0xff]
    %v731 = vld [vmem:[%s8] sm:$0x1]
    %v732 = vld [vmem:[#allocation5] sm:$0xff]
    %v733 = vld [vmem:[#allocation5 + $0x8] sm:$0xff]
    %v734 = vld [vmem:[#allocation5 + $0x10] sm:$0xff]
    %v735 = vld [vmem:[#allocation5 + $0x18] sm:$0xff]
    %v737 = vperm.slane %v731, 0
    %739 = vmatpush.msra.mxu0 0.0
    %740 = vmatpush.msra.mxu0 0.0
    %741 = vmatpush.msra.mxu0 0.0
    %742 = vmatpush.msra.mxu0 0.0
    %743 = vmatpush.msra.mxu0 0.0
    %744 = vmatpush.msra.mxu0 0.0
    %745 = vmatpush.msra.mxu0 0.0
    %746 = vmatpush.msra.mxu0 0.0
    %747 = vmatpush.msra.mxu0 0.0
    %748 = vmatpush.msra.mxu0 0.0
    %749 = vmatpush.msra.mxu0 0.0
    %750 = vmatpush.msra.mxu0 0.0
    %751 = vmatpush.msra.mxu0 %v735
    %752 = vmatpush.msra.mxu0 %v734
    %753 = vmatpush.msra.mxu0 %v733
    %754 = vmatpush.msra.mxu0 %v732
    %755 = vmatmul.f32.gmra.mxu0 %v245
    %v756 = vpop.f32.mrf.mxu0
    %v757 = vadd.f32 %v737, %v756
    %758 = vdwg.mxu0
    %759 = vmatpush.msra.mxu0 0.0
    %760 = vmatpush.msra.mxu0 0.0
    %761 = vmatpush.msra.mxu0 0.0
    %762 = vmatpush.msra.mxu0 0.0
    %763 = vmatpush.msra.mxu0 0.0
    %764 = vmatpush.msra.mxu0 0.0
    %765 = vmatpush.msra.mxu0 0.0
    %766 = vmatpush.msra.mxu0 0.0
    %767 = vmatpush.msra.mxu0 0.0
    %768 = vmatpush.msra.mxu0 0.0
    %769 = vmatpush.msra.mxu0 0.0
    %770 = vmatpush.msra.mxu0 0.0
    %771 = vmatpush.msra.mxu0 %v730
    %772 = vmatpush.msra.mxu0 %v729
    %773 = vmatpush.msra.mxu0 %v728
    %774 = vmatpush.msra.mxu0 %v727
    %775 = vmatmul.f32.gmra.mxu0 %v182
    %v776 = vpop.f32.mrf.mxu0
    %v777 = vadd.f32 0.0, %v776
    %778 = vdwg.mxu0
    %v779 = vadd.f32 %v757, %v777
    %v780 = vxor.u32 %v779, 2147483648
    %v781 = vmul.f32 %v780, 1.442695
    %v782 = vpow.pop %v781
    %v783 = vadd.f32 %v782, 1.0
    %v784 = vrcp.pop %v783
    %v785 = vmul.f32 %v783, %v784
    %v786 = vsub.f32 1.0, %v785
    %v787 = vmul.f32 %v784, %v786
    %v788 = vadd.f32 %v784, %v787
    %vm789 = vweird.f32 %v783
    %vm790 = vweird.f32 %v784
    %vm791 = vmor %vm789, %vm790
    %v792 = vsel %vm791, %v784, %v788
    %v793 = vand.u32 2147483647, %v783
    %vm794 = vcmp.eq.f32.partialorder %v793, 8.507059e+37
    %v795 = vand.u32 %v783, 2147483648
    %v796 = vor.u32 1.1754944e-38, %v795
    %v797 = vsel %vm794, %v796, %v792
    %v798 = vmul.f32 1.0, %v797
    %v799 = vtanh.pop %v779
    %v800 = vmul.f32 %v798, 0.0
    %802 = vrot.lane.b32.xlu0 %v799, 64
    %v803 = vpop.permute.xlu0 %802
    %v805 = vmul.f32 %v798, %v803
    %807 = vrot.lane.b32.xlu0 %v805, 32
    %v808 = vpop.permute.xlu0 %807
    %v810 = vadd.f32 %v800, %v808
    %v811 = vtanh.pop %v810
    %813 = vrot.lane.b32.xlu0 %v811, 64
    %v814 = vpop.permute.xlu0 %813
    %v816 = vmul.f32 %v798, %v814
    %817 = vmatpush.msra.mxu0 0.0
    %818 = vmatpush.msra.mxu0 0.0
    %819 = vmatpush.msra.mxu0 0.0
    %820 = vmatpush.msra.mxu0 0.0
    %821 = vmatpush.msra.mxu0 0.0
    %822 = vmatpush.msra.mxu0 0.0
    %823 = vmatpush.msra.mxu0 0.0
    %824 = vmatpush.msra.mxu0 0.0
    %825 = vmatpush.msra.mxu0 0.0
    %826 = vmatpush.msra.mxu0 0.0
    %827 = vmatpush.msra.mxu0 0.0
    %828 = vmatpush.msra.mxu0 0.0
    %829 = vmatpush.msra.mxu0 %v735
    %830 = vmatpush.msra.mxu0 %v734
    %831 = vmatpush.msra.mxu0 %v733
    %832 = vmatpush.msra.mxu0 %v732
    %833 = vmatmul.f32.gmra.mxu0 %v315
    %v834 = vpop.f32.mrf.mxu0
    %v835 = vadd.f32 %v737, %v834
    %836 = vdwg.mxu0
    %838 = vrot.lane.b32.xlu0 %v816, 32
    %v839 = vpop.permute.xlu0 %838
    %v840 = vsel %vm151, %v839, 0
    %842 = vmatpush.msra.mxu0 0.0
    %843 = vmatpush.msra.mxu0 0.0
    %844 = vmatpush.msra.mxu0 0.0
    %845 = vmatpush.msra.mxu0 0.0
    %846 = vmatpush.msra.mxu0 0.0
    %847 = vmatpush.msra.mxu0 0.0
    %848 = vmatpush.msra.mxu0 0.0
    %849 = vmatpush.msra.mxu0 0.0
    %850 = vmatpush.msra.mxu0 0.0
    %851 = vmatpush.msra.mxu0 0.0
    %852 = vmatpush.msra.mxu0 0.0
    %853 = vmatpush.msra.mxu0 0.0
    %854 = vmatpush.msra.mxu0 %v730
    %855 = vmatpush.msra.mxu0 %v729
    %856 = vmatpush.msra.mxu0 %v728
    %857 = vmatpush.msra.mxu0 %v727
    %858 = vmatmul.f32.gmra.mxu0 %v840
    %v859 = vpop.f32.mrf.mxu0
    %v860 = vadd.f32 0.0, %v859
    %861 = vdwg.mxu0
    %v862 = vadd.f32 %v835, %v860
    %v863 = vxor.u32 %v862, 2147483648
    %v864 = vmul.f32 %v863, 1.442695
    %v865 = vpow.pop %v864
    %v866 = vadd.f32 %v865, 1.0
    %v867 = vrcp.pop %v866
    %v868 = vmul.f32 %v866, %v867
    %v869 = vsub.f32 1.0, %v868
    %v870 = vmul.f32 %v867, %v869
    %v871 = vadd.f32 %v867, %v870
    %vm872 = vweird.f32 %v866
    %vm873 = vweird.f32 %v867
    %vm874 = vmor %vm872, %vm873
    %v875 = vsel %vm874, %v867, %v871
    %v876 = vand.u32 2147483647, %v866
    %vm877 = vcmp.eq.f32.partialorder %v876, 8.507059e+37
    %v878 = vand.u32 %v866, 2147483648
    %v879 = vor.u32 1.1754944e-38, %v878
    %v880 = vsel %vm877, %v879, %v875
    %v881 = vmul.f32 1.0, %v880
    %v882 = vtanh.pop %v862
    %v883 = vmul.f32 %v881, %v810
    %885 = vrot.lane.b32.xlu0 %v882, 64
    %v886 = vpop.permute.xlu0 %885
    %v888 = vmul.f32 %v881, %v886
    %890 = vrot.lane.b32.xlu0 %v888, 32
    %v891 = vpop.permute.xlu0 %890
    %v893 = vadd.f32 %v883, %v891
    %v894 = vtanh.pop %v893
    %896 = vrot.lane.b32.xlu0 %v894, 64
    %v897 = vpop.permute.xlu0 %896
    %v899 = vmul.f32 %v881, %v897
    %900 = vmatpush.msra.mxu0 0.0
    %901 = vmatpush.msra.mxu0 0.0
    %902 = vmatpush.msra.mxu0 0.0
    %903 = vmatpush.msra.mxu0 0.0
    %904 = vmatpush.msra.mxu0 0.0
    %905 = vmatpush.msra.mxu0 0.0
    %906 = vmatpush.msra.mxu0 0.0
    %907 = vmatpush.msra.mxu0 0.0
    %908 = vmatpush.msra.mxu0 0.0
    %909 = vmatpush.msra.mxu0 0.0
    %910 = vmatpush.msra.mxu0 0.0
    %911 = vmatpush.msra.mxu0 0.0
    %912 = vmatpush.msra.mxu0 %v735
    %913 = vmatpush.msra.mxu0 %v734
    %914 = vmatpush.msra.mxu0 %v733
    %915 = vmatpush.msra.mxu0 %v732
    %916 = vmatmul.f32.gmra.mxu0 %v385
    %v917 = vpop.f32.mrf.mxu0
    %v918 = vadd.f32 %v737, %v917
    %919 = vdwg.mxu0
    %921 = vrot.lane.b32.xlu0 %v899, 32
    %v922 = vpop.permute.xlu0 %921
    %v923 = vsel %vm151, %v922, 0
    %925 = vmatpush.msra.mxu0 0.0
    %926 = vmatpush.msra.mxu0 0.0
    %927 = vmatpush.msra.mxu0 0.0
    %928 = vmatpush.msra.mxu0 0.0
    %929 = vmatpush.msra.mxu0 0.0
    %930 = vmatpush.msra.mxu0 0.0
    %931 = vmatpush.msra.mxu0 0.0
    %932 = vmatpush.msra.mxu0 0.0
    %933 = vmatpush.msra.mxu0 0.0
    %934 = vmatpush.msra.mxu0 0.0
    %935 = vmatpush.msra.mxu0 0.0
    %936 = vmatpush.msra.mxu0 0.0
    %937 = vmatpush.msra.mxu0 %v730
    %938 = vmatpush.msra.mxu0 %v729
    %939 = vmatpush.msra.mxu0 %v728
    %940 = vmatpush.msra.mxu0 %v727
    %941 = vmatmul.f32.gmra.mxu0 %v923
    %v942 = vpop.f32.mrf.mxu0
    %v943 = vadd.f32 0.0, %v942
    %944 = vdwg.mxu0
    %v945 = vadd.f32 %v918, %v943
    %v946 = vxor.u32 %v945, 2147483648
    %v947 = vmul.f32 %v946, 1.442695
    %v948 = vpow.pop %v947
    %v949 = vadd.f32 %v948, 1.0
    %v950 = vrcp.pop %v949
    %v951 = vmul.f32 %v949, %v950
    %v952 = vsub.f32 1.0, %v951
    %v953 = vmul.f32 %v950, %v952
    %v954 = vadd.f32 %v950, %v953
    %vm955 = vweird.f32 %v949
    %vm956 = vweird.f32 %v950
    %vm957 = vmor %vm955, %vm956
    %v958 = vsel %vm957, %v950, %v954
    %v959 = vand.u32 2147483647, %v949
    %vm960 = vcmp.eq.f32.partialorder %v959, 8.507059e+37
    %v961 = vand.u32 %v949, 2147483648
    %v962 = vor.u32 1.1754944e-38, %v961
    %v963 = vsel %vm960, %v962, %v958
    %v964 = vmul.f32 1.0, %v963
    %v965 = vtanh.pop %v945
    %v966 = vmul.f32 %v964, %v893
    %968 = vrot.lane.b32.xlu0 %v965, 64
    %v969 = vpop.permute.xlu0 %968
    %v971 = vmul.f32 %v964, %v969
    %973 = vrot.lane.b32.xlu0 %v971, 32
    %v974 = vpop.permute.xlu0 %973
    %v976 = vadd.f32 %v966, %v974
    %v977 = vtanh.pop %v976
    %979 = vrot.lane.b32.xlu0 %v977, 64
    %v980 = vpop.permute.xlu0 %979
    %v982 = vmul.f32 %v964, %v980
    %983 = vmatpush.msra.mxu0 0.0
    %984 = vmatpush.msra.mxu0 0.0
    %985 = vmatpush.msra.mxu0 0.0
    %986 = vmatpush.msra.mxu0 0.0
    %987 = vmatpush.msra.mxu0 0.0
    %988 = vmatpush.msra.mxu0 0.0
    %989 = vmatpush.msra.mxu0 0.0
    %990 = vmatpush.msra.mxu0 0.0
    %991 = vmatpush.msra.mxu0 0.0
    %992 = vmatpush.msra.mxu0 0.0
    %993 = vmatpush.msra.mxu0 0.0
    %994 = vmatpush.msra.mxu0 0.0
    %995 = vmatpush.msra.mxu0 %v735
    %996 = vmatpush.msra.mxu0 %v734
    %997 = vmatpush.msra.mxu0 %v733
    %998 = vmatpush.msra.mxu0 %v732
    %999 = vmatmul.f32.gmra.mxu0 %v455
    %v1000 = vpop.f32.mrf.mxu0
    %v1001 = vadd.f32 %v737, %v1000
    %1002 = vdwg.mxu0
    %1004 = vrot.lane.b32.xlu0 %v982, 32
    %v1005 = vpop.permute.xlu0 %1004
    %v1006 = vsel %vm151, %v1005, 0
    %1008 = vmatpush.msra.mxu0 0.0
    %1009 = vmatpush.msra.mxu0 0.0
    %1010 = vmatpush.msra.mxu0 0.0
    %1011 = vmatpush.msra.mxu0 0.0
    %1012 = vmatpush.msra.mxu0 0.0
    %1013 = vmatpush.msra.mxu0 0.0
    %1014 = vmatpush.msra.mxu0 0.0
    %1015 = vmatpush.msra.mxu0 0.0
    %1016 = vmatpush.msra.mxu0 0.0
    %1017 = vmatpush.msra.mxu0 0.0
    %1018 = vmatpush.msra.mxu0 0.0
    %1019 = vmatpush.msra.mxu0 0.0
    %1020 = vmatpush.msra.mxu0 %v730
    %1021 = vmatpush.msra.mxu0 %v729
    %1022 = vmatpush.msra.mxu0 %v728
    %1023 = vmatpush.msra.mxu0 %v727
    %1024 = vmatmul.f32.gmra.mxu0 %v1006
    %v1025 = vpop.f32.mrf.mxu0
    %v1026 = vadd.f32 0.0, %v1025
    %1027 = vdwg.mxu0
    %v1028 = vadd.f32 %v1001, %v1026
    %v1029 = vxor.u32 %v1028, 2147483648
    %v1030 = vmul.f32 %v1029, 1.442695
    %v1031 = vpow.pop %v1030
    %v1032 = vadd.f32 %v1031, 1.0
    %v1033 = vrcp.pop %v1032
    %v1034 = vmul.f32 %v1032, %v1033
    %v1035 = vsub.f32 1.0, %v1034
    %v1036 = vmul.f32 %v1033, %v1035
    %v1037 = vadd.f32 %v1033, %v1036
    %vm1038 = vweird.f32 %v1032
    %vm1039 = vweird.f32 %v1033
    %vm1040 = vmor %vm1038, %vm1039
    %v1041 = vsel %vm1040, %v1033, %v1037
    %v1042 = vand.u32 2147483647, %v1032
    %vm1043 = vcmp.eq.f32.partialorder %v1042, 8.507059e+37
    %v1044 = vand.u32 %v1032, 2147483648
    %v1045 = vor.u32 1.1754944e-38, %v1044
    %v1046 = vsel %vm1043, %v1045, %v1041
    %v1047 = vmul.f32 1.0, %v1046
    %v1048 = vtanh.pop %v1028
    %v1049 = vmul.f32 %v1047, %v976
    %1051 = vrot.lane.b32.xlu0 %v1048, 64
    %v1052 = vpop.permute.xlu0 %1051
    %v1054 = vmul.f32 %v1047, %v1052
    %1056 = vrot.lane.b32.xlu0 %v1054, 32
    %v1057 = vpop.permute.xlu0 %1056
    %v1059 = vadd.f32 %v1049, %v1057
    %v1060 = vtanh.pop %v1059
    %1062 = vrot.lane.b32.xlu0 %v1060, 64
    %v1063 = vpop.permute.xlu0 %1062
    %v1065 = vmul.f32 %v1047, %v1063
    %1066 = vmatpush.msra.mxu0 0.0
    %1067 = vmatpush.msra.mxu0 0.0
    %1068 = vmatpush.msra.mxu0 0.0
    %1069 = vmatpush.msra.mxu0 0.0
    %1070 = vmatpush.msra.mxu0 0.0
    %1071 = vmatpush.msra.mxu0 0.0
    %1072 = vmatpush.msra.mxu0 0.0
    %1073 = vmatpush.msra.mxu0 0.0
    %1074 = vmatpush.msra.mxu0 0.0
    %1075 = vmatpush.msra.mxu0 0.0
    %1076 = vmatpush.msra.mxu0 0.0
    %1077 = vmatpush.msra.mxu0 0.0
    %1078 = vmatpush.msra.mxu0 %v735
    %1079 = vmatpush.msra.mxu0 %v734
    %1080 = vmatpush.msra.mxu0 %v733
    %1081 = vmatpush.msra.mxu0 %v732
    %1082 = vmatmul.f32.gmra.mxu0 %v521
    %v1083 = vpop.f32.mrf.mxu0
    %v1084 = vadd.f32 %v737, %v1083
    %1085 = vdwg.mxu0
    %1087 = vrot.lane.b32.xlu0 %v1065, 32
    %v1088 = vpop.permute.xlu0 %1087
    %v1089 = vsel %vm151, %v1088, 0
    %1091 = vmatpush.msra.mxu0 0.0
    %1092 = vmatpush.msra.mxu0 0.0
    %1093 = vmatpush.msra.mxu0 0.0
    %1094 = vmatpush.msra.mxu0 0.0
    %1095 = vmatpush.msra.mxu0 0.0
    %1096 = vmatpush.msra.mxu0 0.0
    %1097 = vmatpush.msra.mxu0 0.0
    %1098 = vmatpush.msra.mxu0 0.0
    %1099 = vmatpush.msra.mxu0 0.0
    %1100 = vmatpush.msra.mxu0 0.0
    %1101 = vmatpush.msra.mxu0 0.0
    %1102 = vmatpush.msra.mxu0 0.0
    %1103 = vmatpush.msra.mxu0 %v730
    %1104 = vmatpush.msra.mxu0 %v729
    %1105 = vmatpush.msra.mxu0 %v728
    %1106 = vmatpush.msra.mxu0 %v727
    %1107 = vmatmul.f32.gmra.mxu0 %v1089
    %v1108 = vpop.f32.mrf.mxu0
    %v1109 = vadd.f32 0.0, %v1108
    %1110 = vdwg.mxu0
    %v1111 = vadd.f32 %v1084, %v1109
    %v1112 = vxor.u32 %v1111, 2147483648
    %v1113 = vmul.f32 %v1112, 1.442695
    %v1114 = vpow.pop %v1113
    %v1115 = vadd.f32 %v1114, 1.0
    %v1116 = vrcp.pop %v1115
    %v1117 = vmul.f32 %v1115, %v1116
    %v1118 = vsub.f32 1.0, %v1117
    %v1119 = vmul.f32 %v1116, %v1118
    %v1120 = vadd.f32 %v1116, %v1119
    %vm1121 = vweird.f32 %v1115
    %vm1122 = vweird.f32 %v1116
    %vm1123 = vmor %vm1121, %vm1122
    %v1124 = vsel %vm1123, %v1116, %v1120
    %v1125 = vand.u32 2147483647, %v1115
    %vm1126 = vcmp.eq.f32.partialorder %v1125, 8.507059e+37
    %v1127 = vand.u32 %v1115, 2147483648
    %v1128 = vor.u32 1.1754944e-38, %v1127
    %v1129 = vsel %vm1126, %v1128, %v1124
    %v1130 = vmul.f32 1.0, %v1129
    %v1131 = vtanh.pop %v1111
    %v1132 = vmul.f32 %v1130, %v1059
    %1134 = vrot.lane.b32.xlu0 %v1131, 64
    %v1135 = vpop.permute.xlu0 %1134
    %v1137 = vmul.f32 %v1130, %v1135
    %1139 = vrot.lane.b32.xlu0 %v1137, 32
    %v1140 = vpop.permute.xlu0 %1139
    %v1142 = vadd.f32 %v1132, %v1140
    %v1143 = vtanh.pop %v1142
    %1145 = vrot.lane.b32.xlu0 %v1143, 64
    %v1146 = vpop.permute.xlu0 %1145
    %v1148 = vmul.f32 %v1130, %v1146
    %1149 = vmatpush.msra.mxu0 0.0
    %1150 = vmatpush.msra.mxu0 0.0
    %1151 = vmatpush.msra.mxu0 0.0
    %1152 = vmatpush.msra.mxu0 0.0
    %1153 = vmatpush.msra.mxu0 0.0
    %1154 = vmatpush.msra.mxu0 0.0
    %1155 = vmatpush.msra.mxu0 0.0
    %1156 = vmatpush.msra.mxu0 0.0
    %1157 = vmatpush.msra.mxu0 0.0
    %1158 = vmatpush.msra.mxu0 0.0
    %1159 = vmatpush.msra.mxu0 0.0
    %1160 = vmatpush.msra.mxu0 0.0
    %1161 = vmatpush.msra.mxu0 %v735
    %1162 = vmatpush.msra.mxu0 %v734
    %1163 = vmatpush.msra.mxu0 %v733
    %1164 = vmatpush.msra.mxu0 %v732
    %1165 = vmatmul.f32.gmra.mxu0 %v591
    %v1166 = vpop.f32.mrf.mxu0
    %v1167 = vadd.f32 %v737, %v1166
    %1168 = vdwg.mxu0
    %1170 = vrot.lane.b32.xlu0 %v1148, 32
    %v1171 = vpop.permute.xlu0 %1170
    %v1172 = vsel %vm151, %v1171, 0
    %1174 = vmatpush.msra.mxu0 0.0
    %1175 = vmatpush.msra.mxu0 0.0
    %1176 = vmatpush.msra.mxu0 0.0
    %1177 = vmatpush.msra.mxu0 0.0
    %1178 = vmatpush.msra.mxu0 0.0
    %1179 = vmatpush.msra.mxu0 0.0
    %1180 = vmatpush.msra.mxu0 0.0
    %1181 = vmatpush.msra.mxu0 0.0
    %1182 = vmatpush.msra.mxu0 0.0
    %1183 = vmatpush.msra.mxu0 0.0
    %1184 = vmatpush.msra.mxu0 0.0
    %1185 = vmatpush.msra.mxu0 0.0
    %1186 = vmatpush.msra.mxu0 %v730
    %1187 = vmatpush.msra.mxu0 %v729
    %1188 = vmatpush.msra.mxu0 %v728
    %1189 = vmatpush.msra.mxu0 %v727
    %1190 = vmatmul.f32.gmra.mxu0 %v1172
    %v1191 = vpop.f32.mrf.mxu0
    %v1192 = vadd.f32 0.0, %v1191
    %1193 = vdwg.mxu0
    %v1194 = vadd.f32 %v1167, %v1192
    %v1195 = vxor.u32 %v1194, 2147483648
    %v1196 = vmul.f32 %v1195, 1.442695
    %v1197 = vpow.pop %v1196
    %v1198 = vadd.f32 %v1197, 1.0
    %v1199 = vrcp.pop %v1198
    %v1200 = vmul.f32 %v1198, %v1199
    %v1201 = vsub.f32 1.0, %v1200
    %v1202 = vmul.f32 %v1199, %v1201
    %v1203 = vadd.f32 %v1199, %v1202
    %vm1204 = vweird.f32 %v1198
    %vm1205 = vweird.f32 %v1199
    %vm1206 = vmor %vm1204, %vm1205
    %v1207 = vsel %vm1206, %v1199, %v1203
    %v1208 = vand.u32 2147483647, %v1198
    %vm1209 = vcmp.eq.f32.partialorder %v1208, 8.507059e+37
    %v1210 = vand.u32 %v1198, 2147483648
    %v1211 = vor.u32 1.1754944e-38, %v1210
    %v1212 = vsel %vm1209, %v1211, %v1207
    %v1213 = vmul.f32 1.0, %v1212
    %v1214 = vtanh.pop %v1194
    %v1215 = vmul.f32 %v1213, %v1142
    %1217 = vrot.lane.b32.xlu0 %v1214, 64
    %v1218 = vpop.permute.xlu0 %1217
    %v1220 = vmul.f32 %v1213, %v1218
    %1222 = vrot.lane.b32.xlu0 %v1220, 32
    %v1223 = vpop.permute.xlu0 %1222
    %v1225 = vadd.f32 %v1215, %v1223
    %v1226 = vtanh.pop %v1225
    %1228 = vrot.lane.b32.xlu0 %v1226, 64
    %v1229 = vpop.permute.xlu0 %1228
    %v1231 = vmul.f32 %v1213, %v1229
    %1232 = vmatpush.msra.mxu0 0.0
    %1233 = vmatpush.msra.mxu0 0.0
    %1234 = vmatpush.msra.mxu0 0.0
    %1235 = vmatpush.msra.mxu0 0.0
    %1236 = vmatpush.msra.mxu0 0.0
    %1237 = vmatpush.msra.mxu0 0.0
    %1238 = vmatpush.msra.mxu0 0.0
    %1239 = vmatpush.msra.mxu0 0.0
    %1240 = vmatpush.msra.mxu0 0.0
    %1241 = vmatpush.msra.mxu0 0.0
    %1242 = vmatpush.msra.mxu0 0.0
    %1243 = vmatpush.msra.mxu0 0.0
    %1244 = vmatpush.msra.mxu0 %v735
    %1245 = vmatpush.msra.mxu0 %v734
    %1246 = vmatpush.msra.mxu0 %v733
    %1247 = vmatpush.msra.mxu0 %v732
    %1248 = vmatmul.f32.gmra.mxu0 %v661
    %v1249 = vpop.f32.mrf.mxu0
    %v1250 = vadd.f32 %v737, %v1249
    %1251 = vdwg.mxu0
    %1253 = vrot.lane.b32.xlu0 %v1231, 32
    %v1254 = vpop.permute.xlu0 %1253
    %v1255 = vsel %vm151, %v1254, 0
    %1257 = vmatpush.msra.mxu0 0.0
    %1258 = vmatpush.msra.mxu0 0.0
    %1259 = vmatpush.msra.mxu0 0.0
    %1260 = vmatpush.msra.mxu0 0.0
    %1261 = vmatpush.msra.mxu0 0.0
    %1262 = vmatpush.msra.mxu0 0.0
    %1263 = vmatpush.msra.mxu0 0.0
    %1264 = vmatpush.msra.mxu0 0.0
    %1265 = vmatpush.msra.mxu0 0.0
    %1266 = vmatpush.msra.mxu0 0.0
    %1267 = vmatpush.msra.mxu0 0.0
    %1268 = vmatpush.msra.mxu0 0.0
    %1269 = vmatpush.msra.mxu0 %v730
    %1270 = vmatpush.msra.mxu0 %v729
    %1271 = vmatpush.msra.mxu0 %v728
    %1272 = vmatpush.msra.mxu0 %v727
    %1273 = vmatmul.f32.gmra.mxu0 %v1255
    %v1274 = vpop.f32.mrf.mxu0
    %v1275 = vadd.f32 0.0, %v1274
    %1276 = vdwg.mxu0
    %v1277 = vadd.f32 %v1250, %v1275
    %v1278 = vxor.u32 %v1277, 2147483648
    %v1279 = vmul.f32 %v1278, 1.442695
    %v1280 = vpow.pop %v1279
    %v1281 = vadd.f32 %v1280, 1.0
    %v1282 = vrcp.pop %v1281
    %v1283 = vmul.f32 %v1281, %v1282
    %v1284 = vsub.f32 1.0, %v1283
    %v1285 = vmul.f32 %v1282, %v1284
    %v1286 = vadd.f32 %v1282, %v1285
    %vm1287 = vweird.f32 %v1281
    %vm1288 = vweird.f32 %v1282
    %vm1289 = vmor %vm1287, %vm1288
    %v1290 = vsel %vm1289, %v1282, %v1286
    %v1291 = vand.u32 2147483647, %v1281
    %vm1292 = vcmp.eq.f32.partialorder %v1291, 8.507059e+37
    %v1293 = vand.u32 %v1281, 2147483648
    %v1294 = vor.u32 1.1754944e-38, %v1293
    %v1295 = vsel %vm1292, %v1294, %v1290
    %v1296 = vmul.f32 1.0, %v1295
    %v1297 = vtanh.pop %v1277
    %v1298 = vmul.f32 %v1296, %v1225
    %1300 = vrot.lane.b32.xlu0 %v1297, 64
    %v1301 = vpop.permute.xlu0 %1300
    %v1303 = vmul.f32 %v1296, %v1301
    %1305 = vrot.lane.b32.xlu0 %v1303, 32
    %v1306 = vpop.permute.xlu0 %1305
    %v1308 = vadd.f32 %v1298, %v1306
    %v1309 = vtanh.pop %v1308
    %1311 = vrot.lane.b32.xlu0 %v1309, 64
    %v1312 = vpop.permute.xlu0 %1311
    %v1314 = vmul.f32 %v1296, %v1312
    %v1316 = vrot.slane %v726, 6
    %1317 = vrot.lane.b32.xlu0 %v1316, 32
    %v1318 = vpop.permute.xlu0 %1317
    %v1319 = vsel %vm151, %v1318, 0
    %1321 = vmatpush.msra.mxu0 0.0
    %1322 = vmatpush.msra.mxu0 0.0
    %1323 = vmatpush.msra.mxu0 0.0
    %1324 = vmatpush.msra.mxu0 0.0
    %1325 = vmatpush.msra.mxu0 0.0
    %1326 = vmatpush.msra.mxu0 0.0
    %1327 = vmatpush.msra.mxu0 0.0
    %1328 = vmatpush.msra.mxu0 0.0
    %1329 = vmatpush.msra.mxu0 0.0
    %1330 = vmatpush.msra.mxu0 0.0
    %1331 = vmatpush.msra.mxu0 0.0
    %1332 = vmatpush.msra.mxu0 0.0
    %1333 = vmatpush.msra.mxu0 %v735
    %1334 = vmatpush.msra.mxu0 %v734
    %1335 = vmatpush.msra.mxu0 %v733
    %1336 = vmatpush.msra.mxu0 %v732
    %1337 = vmatmul.f32.gmra.mxu0 %v1319
    %v1338 = vpop.f32.mrf.mxu0
    %v1339 = vadd.f32 %v737, %v1338
    %1340 = vdwg.mxu0
    %1342 = vrot.lane.b32.xlu0 %v1314, 32
    %v1343 = vpop.permute.xlu0 %1342
    %v1344 = vsel %vm151, %v1343, 0
    %1346 = vmatpush.msra.mxu0 0.0
    %1347 = vmatpush.msra.mxu0 0.0
    %1348 = vmatpush.msra.mxu0 0.0
    %1349 = vmatpush.msra.mxu0 0.0
    %1350 = vmatpush.msra.mxu0 0.0
    %1351 = vmatpush.msra.mxu0 0.0
    %1352 = vmatpush.msra.mxu0 0.0
    %1353 = vmatpush.msra.mxu0 0.0
    %1354 = vmatpush.msra.mxu0 0.0
    %1355 = vmatpush.msra.mxu0 0.0
    %1356 = vmatpush.msra.mxu0 0.0
    %1357 = vmatpush.msra.mxu0 0.0
    %1358 = vmatpush.msra.mxu0 %v730
    %1359 = vmatpush.msra.mxu0 %v729
    %1360 = vmatpush.msra.mxu0 %v728
    %1361 = vmatpush.msra.mxu0 %v727
    %1362 = vmatmul.f32.gmra.mxu0 %v1344
    %v1363 = vpop.f32.mrf.mxu0
    %v1364 = vadd.f32 0.0, %v1363
    %1365 = vdwg.mxu0
    %v1366 = vadd.f32 %v1339, %v1364
    %v1367 = vxor.u32 %v1366, 2147483648
    %v1368 = vmul.f32 %v1367, 1.442695
    %v1369 = vpow.pop %v1368
    %v1370 = vadd.f32 %v1369, 1.0
    %v1371 = vrcp.pop %v1370
    %v1372 = vmul.f32 %v1370, %v1371
    %v1373 = vsub.f32 1.0, %v1372
    %v1374 = vmul.f32 %v1371, %v1373
    %v1375 = vadd.f32 %v1371, %v1374
    %vm1376 = vweird.f32 %v1370
    %vm1377 = vweird.f32 %v1371
    %vm1378 = vmor %vm1376, %vm1377
    %v1379 = vsel %vm1378, %v1371, %v1375
    %v1380 = vand.u32 2147483647, %v1370
    %vm1381 = vcmp.eq.f32.partialorder %v1380, 8.507059e+37
    %v1382 = vand.u32 %v1370, 2147483648
    %v1383 = vor.u32 1.1754944e-38, %v1382
    %v1384 = vsel %vm1381, %v1383, %v1379
    %v1385 = vmul.f32 1.0, %v1384
    %v1386 = vtanh.pop %v1366
    %v1387 = vmul.f32 %v1385, %v1308
    %1389 = vrot.lane.b32.xlu0 %v1386, 64
    %v1390 = vpop.permute.xlu0 %1389
    %v1392 = vmul.f32 %v1385, %v1390
    %1394 = vrot.lane.b32.xlu0 %v1392, 32
    %v1395 = vpop.permute.xlu0 %1394
    %v1397 = vadd.f32 %v1387, %v1395
    %v1398 = vtanh.pop %v1397
    %1400 = vrot.lane.b32.xlu0 %v1398, 64
    %v1401 = vpop.permute.xlu0 %1400
    %v1403 = vmul.f32 %v1385, %v1401
    %v1404 = vld [vmem:[#allocation8] sm:$0xff]
    %v1405 = vld [vmem:[#allocation8 + $0x8] sm:$0xff]
    %v1406 = vld [vmem:[#allocation8 + $0x10] sm:$0xff]
    %v1407 = vld [vmem:[#allocation8 + $0x18] sm:$0xff]
    %v1408 = vld [vmem:[%s10] sm:$0x1]
    %v1410 = vperm.slane %v1408, 0
    %1413 = vrot.lane.b32.xlu0 %v1403, 32
    %v1414 = vpop.permute.xlu0 %1413
    %v1415 = vsel %vm151, %v1414, 0
    %1417 = vmatpush.msra.mxu0 0.0
    %1418 = vmatpush.msra.mxu0 0.0
    %1419 = vmatpush.msra.mxu0 0.0
    %1420 = vmatpush.msra.mxu0 0.0
    %1421 = vmatpush.msra.mxu0 0.0
    %1422 = vmatpush.msra.mxu0 0.0
    %1423 = vmatpush.msra.mxu0 0.0
    %1424 = vmatpush.msra.mxu0 0.0
    %1425 = vmatpush.msra.mxu0 0.0
    %1426 = vmatpush.msra.mxu0 0.0
    %1427 = vmatpush.msra.mxu0 0.0
    %1428 = vmatpush.msra.mxu0 0.0
    %1429 = vmatpush.msra.mxu0 %v1407
    %1430 = vmatpush.msra.mxu0 %v1406
    %1431 = vmatpush.msra.mxu0 %v1405
    %1432 = vmatpush.msra.mxu0 %v1404
    %1433 = vmatmul.f32.gmra.mxu0 %v1415
    %v1434 = vpop.f32.mrf.mxu0
    %v1435 = vadd.f32 %v1410, %v1434
    %1436 = vdwg.mxu0
    %v1437 = vmax.f32 %v1435, 0.0
    %v1438 = vld [vmem:[%s11] sm:$0xff]
    %v1439 = vld [vmem:[%s11 + $0x8] sm:$0xff]
    %v1440 = vld [vmem:[%s11 + $0x10] sm:$0xff]
    %v1441 = vld [vmem:[%s11 + $0x18] sm:$0xff]
    %v1442 = vld [vmem:[#allocation2] sm:$0x1]
    %v1444 = vperm.slane %v1442, 0
    %v1447 = vsel %vm151, %v1437, 0
    %1449 = vmatpush.msra.mxu0 0.0
    %1450 = vmatpush.msra.mxu0 0.0
    %1451 = vmatpush.msra.mxu0 0.0
    %1452 = vmatpush.msra.mxu0 0.0
    %1453 = vmatpush.msra.mxu0 0.0
    %1454 = vmatpush.msra.mxu0 0.0
    %1455 = vmatpush.msra.mxu0 0.0
    %1456 = vmatpush.msra.mxu0 0.0
    %1457 = vmatpush.msra.mxu0 0.0
    %1458 = vmatpush.msra.mxu0 0.0
    %1459 = vmatpush.msra.mxu0 0.0
    %1460 = vmatpush.msra.mxu0 0.0
    %1461 = vmatpush.msra.mxu0 %v1441
    %1462 = vmatpush.msra.mxu0 %v1440
    %1463 = vmatpush.msra.mxu0 %v1439
    %1464 = vmatpush.msra.mxu0 %v1438
    %1465 = vmatmul.f32.gmra.mxu0 %v1447
    %v1466 = vpop.f32.mrf.mxu0
    %v1467 = vadd.f32 %v1444, %v1466
    %1468 = vdwg.mxu0
    %vm1469 = vcmask 1024
    %1470 = vst.msk [vmem:[%s13] sm:$0x3] %vm1469, %v1467
    // Predicated region
    $region70: #{tpu_custom_call.1} parent=1 // pred_check
      _
    $region71: #{tpu_custom_call.1} parent=1 // pred_check_branch
      %1472 = sbr.rel (0) target = $region73
    $region72: #{tpu_custom_call.1} parent=1 // pred_region
      _
    $region73: #{tpu_custom_call.1} parent=1 // pred_fallthru
      _
    // Predicated region
    $region74: #{tpu_custom_call.1} parent=1 // pred_check
      _
    $region75: #{tpu_custom_call.1} parent=1 // pred_check_branch
      %1474 = sbr.rel (0) target = $region77
    $region76: #{tpu_custom_call.1} parent=1 // pred_region
      _
    $region77: #{tpu_custom_call.1} parent=1 // pred_fallthru
      _
    %1475 = vsyncpa [#allocation4], 1
    %1476 = vsyncpa [#allocation6], 1
    %1477 = vsyncpa [#allocation9], 1

</llo_original>
